<compile_context>
chip_gen: v6e
topology: v6e:2x2x1
jax: 0.10.0
libtpu: 0.0.40
codegen_flags: <defaults>
</compile_context>

<pallas_src>
import functools

import jax
import jax.numpy as jnp
from jax.experimental import pallas as pl
from jax.experimental.pallas import tpu as pltpu


# ----------------------------------------------------------------------------- kernel

def _gru_layer_kernel(gi_ref, whh_ref, bhhn_ref, out_ref, h_ref, *, t_blk, h_pad):
    """One direction x one chunk of T_blk time steps of a GRU layer.

    Grid: (num_dirs, num_chunks).  Axis 0 ("parallel") picks the direction,
    axis 1 ("arbitrary") walks time chunks sequentially (recurrence carry in h_ref).

    gi_ref   : (1, T_blk, B_pad, 3*H_pad) f32   precomputed x@W_ih + b_ih (+ b_hh for r,z)
    whh_ref  : (1, H_pad, 3*H_pad)        bf16  hidden weights (pre-transposed, [r|z|n])
    bhhn_ref : (1, 1, H_pad)              f32   b_hh for the n gate only
    out_ref  : (1, T_blk, B_pad, H_pad)   f32   hidden states (processing order)
    h_ref    : (B_pad, H_pad)             f32   VMEM scratch carrying h across chunks
    """
    c = pl.program_id(1)

    @pl.when(c == 0)
    def _():
        h_ref[...] = jnp.zeros_like(h_ref)

    whh = whh_ref[0]                      # (H_pad, 3*H_pad) bf16, held across the loop
    bhh_n = bhhn_ref[0]                   # (1, H_pad) f32

    h = h_ref[...]                        # (B_pad, H_pad) f32 carry
    for t in range(t_blk):                # static unrolled inner loop over time steps
        gi = gi_ref[0, t]                 # (B_pad, 3*H_pad) f32
        gh = jnp.dot(h.astype(whh.dtype), whh,
                     preferred_element_type=jnp.float32)   # (B_pad, 3*H_pad) f32

        # 128-aligned gate slices (H_pad is a multiple of 128).
        i_r = gi[:, :h_pad]
        i_z = gi[:, h_pad:2 * h_pad]
        i_n = gi[:, 2 * h_pad:]
        h_r = gh[:, :h_pad]
        h_z = gh[:, h_pad:2 * h_pad]
        h_n = gh[:, 2 * h_pad:]

        r = jax.nn.sigmoid(i_r + h_r)                     # b_ih_r + b_hh_r already in i_r
        z = jax.nn.sigmoid(i_z + h_z)
        n = jnp.tanh(i_n + r * (h_n + bhh_n))             # b_hh_n kept separate (scaled by r)
        h = (1.0 - z) * n + z * h

        out_ref[0, t] = h                                 # lane-dense (B_pad, H_pad) store
    h_ref[...] = h


# --------------------------------------------------------------------------- utilities

def _round_up(x, m):
    return (x + m - 1) // m * m


def _pick_time_block(s, cap=32):
    """Largest divisor of S not exceeding cap (keeps S % T_blk == 0)."""
    for t in range(min(s, cap), 0, -1):
        if s % t == 0:
            return t
    return 1


def _pad_gates_out(w, h, h_pad):
    """Pad the 3*H gate axis (last dim) to 3*H_pad, per-gate, with zeros."""
    r, z, n = jnp.split(w, 3, axis=-1)
    pad = [(0, 0)] * (w.ndim - 1) + [(0, h_pad - h)]
    return jnp.concatenate([jnp.pad(g, pad) for g in (r, z, n)], axis=-1)


def _prep_layer(layer_params, h, h_pad, num_dirs):
    """Transpose / pad / fold biases for one layer, all directions."""
    wih_list, bias_list, whh_list, bhhn_list = [], [], [], []
    for d in range(num_dirs):
        p = layer_params[d]
        w_ih, w_hh, b_ih, b_hh = p["w_ih"], p["w_hh"], p["b_ih"], p["b_hh"]
        # Fold b_hh for the r and z gates into the hoisted input projection bias.
        b_fold = b_ih + jnp.concatenate([b_hh[:2 * h], jnp.zeros((h,), b_hh.dtype)])
        wih_t = _pad_gates_out(w_ih.T, h, h_pad)                      # (in, 3*H_pad)
        bias = _pad_gates_out(b_fold[None, :], h, h_pad)              # (1, 3*H_pad)
        whh_t = _pad_gates_out(w_hh.T, h, h_pad)                      # (H, 3*H_pad)
        whh_t = jnp.pad(whh_t, ((0, h_pad - h), (0, 0)))              # (H_pad, 3*H_pad)
        bhh_n = jnp.pad(b_hh[2 * h:], (0, h_pad - h))[None, :]        # (1, H_pad)
        wih_list.append(wih_t)
        bias_list.append(bias)
        whh_list.append(whh_t)
        bhhn_list.append(bhh_n)
    return wih_list, bias_list, jnp.stack(whh_list), jnp.stack(bhhn_list)


# ----------------------------------------------------------------------------- forward

@functools.partial(jax.jit, static_argnames=("bidirectional",))
def rnn_encoder_forward(embed_bse, params, bidirectional=True):
    """embed_bse: (B, S, E) batch_first input.  Returns enc: (B, layers*dirs*H)."""
    B, S, E = embed_bse.shape
    H = params[0][0]["w_hh"].shape[1]
    num_dirs = 2 if bidirectional else 1
    H_pad = _round_up(H, 128)
    B_pad = _round_up(B, 8)
    T_blk = _pick_time_block(S)
    n_chunks = S // T_blk

    x = jnp.transpose(embed_bse, (1, 0, 2)).astype(jnp.float32)      # (S, B, E) time-major
    h_n_slices = []                                                   # l0_fwd, l0_bwd, l1_fwd, ...

    kernel = functools.partial(_gru_layer_kernel, t_blk=T_blk, h_pad=H_pad)

    for layer_params in params:
        wih_l, bias_l, whh_all, bhhn_all = _prep_layer(layer_params, H, H_pad, num_dirs)

        # Hoisted input projection for all time steps of both directions (big MXU matmul,
        # bf16 inputs / f32 accumulation, outside the serial recurrence).
        gi_dirs = []
        for d in range(num_dirs):
            gi = jnp.einsum("sbe,ek->sbk",
                            x.astype(jnp.bfloat16), wih_l[d].astype(jnp.bfloat16),
                            preferred_element_type=jnp.float32) + bias_l[d]
            gi = jnp.pad(gi, ((0, 0), (0, B_pad - B), (0, 0)))        # (S, B_pad, 3*H_pad)
            if d == 1:
                gi = gi[::-1]               # backward direction processes time reversed
            gi_dirs.append(gi)
        gi_all = jnp.stack(gi_dirs)          # (num_dirs, S, B_pad, 3*H_pad)

        out = pl.pallas_call(
            kernel,
            out_shape=jax.ShapeDtypeStruct((num_dirs, S, B_pad, H_pad), jnp.float32),
            grid=(num_dirs, n_chunks),
            in_specs=[
                pl.BlockSpec((1, T_blk, B_pad, 3 * H_pad), lambda d, c: (d, c, 0, 0)),
                pl.BlockSpec((1, H_pad, 3 * H_pad), lambda d, c: (d, 0, 0)),
                pl.BlockSpec((1, 1, H_pad), lambda d, c: (d, 0, 0)),
            ],
            out_specs=pl.BlockSpec((1, T_blk, B_pad, H_pad), lambda d, c: (d, c, 0, 0)),
            scratch_shapes=[pltpu.VMEM((B_pad, H_pad), jnp.float32)],
            compiler_params=pltpu.CompilerParams(
                dimension_semantics=("parallel", "arbitrary"),   # dirs across cores, time serial
                vmem_limit_bytes=32 * 1024 * 1024),
        )(gi_all, whh_all.astype(jnp.bfloat16), bhhn_all)

        fwd = out[0, :, :B, :H]                                  # (S, B, H) original time order
        dir_outs = [fwd]
        h_n_slices.append(fwd[-1])                               # forward final hidden
        if num_dirs == 2:
            bwd = out[1, ::-1, :B, :H]                           # back to original time order
            dir_outs.append(bwd)
            h_n_slices.append(bwd[0])                            # backward final hidden
        x = jnp.concatenate(dir_outs, axis=-1)                   # (S, B, dirs*H) next-layer input

    return jnp.concatenate(h_n_slices, axis=1)                   # (B, layers*dirs*H)


# ------------------------------------------------------------------ reference & params

def _gru_reference(embed_bse, params, bidirectional):
    """Pure-JAX f32 reference matching torch.nn.GRU semantics."""
    num_dirs = 2 if bidirectional else 1
    x = jnp.transpose(embed_bse, (1, 0, 2)).astype(jnp.float32)
    B = x.shape[1]
    H = params[0][0]["w_hh"].shape[1]
    h_n_slices = []
    for layer_params in params:
        outs = []
        for d in range(num_dirs):
            p = layer_params[d]
            wih, whh, bih, bhh = p["w_ih"], p["w_hh"], p["b_ih"], p["b_hh"]
            xs = x[::-1] if d == 1 else x

            def step(h, xt, wih=wih, whh=whh, bih=bih, bhh=bhh):
                gi = xt @ wih.T + bih
                gh = h @ whh.T + bhh
                i_r, i_z, i_n = jnp.split(gi, 3, -1)
                h_r, h_z, h_nn = jnp.split(gh, 3, -1)
                r = jax.nn.sigmoid(i_r + h_r)
                z = jax.nn.sigmoid(i_z + h_z)
                n = jnp.tanh(i_n + r * h_nn)
                hn = (1.0 - z) * n + z * h
                return hn, hn

            h_last, ys = jax.lax.scan(step, jnp.zeros((B, H), jnp.float32), xs)
            if d == 1:
                ys = ys[::-1]
            outs.append(ys)
            h_n_slices.append(h_last)
        x = jnp.concatenate(outs, axis=-1)
    return jnp.concatenate(h_n_slices, axis=1)


def init_gru_params(key, nemb, hidden_size, num_layers, bidirectional):
    """PyTorch-layout GRU params, uniform(-1/sqrt(H), 1/sqrt(H))."""
    num_dirs = 2 if bidirectional else 1
    bound = 1.0 / float(hidden_size) ** 0.5
    params = []
    for layer in range(num_layers):
        in_sz = nemb if layer == 0 else hidden_size * num_dirs
        layer_p = []
        for _ in range(num_dirs):
            key, k1, k2, k3, k4 = jax.random.split(key, 5)
            layer_p.append(dict(
                w_ih=jax.random.uniform(k1, (3 * hidden_size, in_sz), jnp.float32, -bound, bound),
                w_hh=jax.random.uniform(k2, (3 * hidden_size, hidden_size), jnp.float32, -bound, bound),
                b_ih=jax.random.uniform(k3, (3 * hidden_size,), jnp.float32, -bound, bound),
                b_hh=jax.random.uniform(k4, (3 * hidden_size,), jnp.float32, -bound, bound),
            ))
        params.append(layer_p)
    return params


if __name__ == "__main__":
    batch, seq, nemb = 2, 8, 16
    hidden_size, num_layers, bidirectional = 32, 2, True

    key = jax.random.PRNGKey(0)
    k_embed, k_params = jax.random.split(key)
    embed = jax.random.normal(k_embed, (batch, seq, nemb), jnp.float32)
    params = init_gru_params(k_params, nemb, hidden_size, num_layers, bidirectional)

    enc = rnn_encoder_forward(embed, params, bidirectional=bidirectional)
    enc = jax.block_until_ready(enc)

    expected = (batch, num_layers * (2 if bidirectional else 1) * hidden_size)
    assert enc.shape == expected, (enc.shape, expected)
    assert bool(jnp.all(jnp.isfinite(enc)))

    ref = _gru_reference(embed, params, bidirectional)
    # bf16 matmul inputs (f32 accumulation) -> loose tolerance vs the f32 reference.
    assert jnp.allclose(enc, ref, atol=5e-2, rtol=5e-2), float(jnp.max(jnp.abs(enc - ref)))

    print("KERNEL_OK")
</pallas_src>

<mosaic_0001>
module attributes {stable_mosaic.version = 11 : i64} {
  func.func @_gru_layer_kernel(%arg0: i32, %arg1: i32, %arg2: memref<1x8x8x384xf32, #tpu.memory_space<vmem>>, %arg3: memref<1x128x384xbf16, #tpu.memory_space<vmem>>, %arg4: memref<1x1x128xf32, #tpu.memory_space<vmem>>, %arg5: memref<1x8x8x128xf32, #tpu.memory_space<vmem>>, %arg6: memref<8x128xf32, #tpu.memory_space<vmem>>) attributes {dimension_semantics = [#tpu.dimension_semantics<parallel>, #tpu.dimension_semantics<arbitrary>], iteration_bounds = array<i64: 2, 1>, scalar_prefetch = 0 : i64, scratch_operands = 1 : i64, tpu.core_type = #tpu.core_type<tc>, window_params = [{transform_indices = @transform_0, window_bounds = array<i64: 1, 8, 8, 384>}, {transform_indices = @transform_1, window_bounds = array<i64: 1, 128, 384>}, {transform_indices = @transform_2, window_bounds = array<i64: 1, 1, 128>}, {transform_indices = @transform_3, window_bounds = array<i64: 1, 8, 8, 128>}]} {
    %c0_i32 = arith.constant 0 : i32
    %0 = arith.cmpi eq, %arg1, %c0_i32 : i32
    %1 = arith.extui %0 : i1 to i32
    %c0_i32_0 = arith.constant 0 : i32
    %2 = arith.cmpi ne, %1, %c0_i32_0 : i32
    scf.if %2 {
      %cst_98 = arith.constant 0.000000e+00 : f32
      %289 = vector.broadcast %cst_98 : f32 to vector<8x128xf32>
      %c0_99 = arith.constant 0 : index
      %c0_100 = arith.constant 0 : index
      %290 = vector.load %arg6[%c0_99, %c0_100] : memref<8x128xf32, #tpu.memory_space<vmem>>, vector<8x128xf32>
      tpu.vector_store %arg6[%c0_99, %c0_100], %289 {strides = array<i32>} : memref<8x128xf32, #tpu.memory_space<vmem>>, vector<8x128xf32>,
    } else {
    }
    %c0 = arith.constant 0 : index
    %c0_1 = arith.constant 0 : index
    %c0_2 = arith.constant 0 : index
    %3 = vector.load %arg3[%c0, %c0_1, %c0_2] : memref<1x128x384xbf16, #tpu.memory_space<vmem>>, vector<1x128x384xbf16>
    %4 = vector.shape_cast %3 : vector<1x128x384xbf16> to vector<128x384xbf16>
    %c0_3 = arith.constant 0 : index
    %c0_4 = arith.constant 0 : index
    %c0_5 = arith.constant 0 : index
    %5 = vector.load %arg4[%c0_3, %c0_4, %c0_5] : memref<1x1x128xf32, #tpu.memory_space<vmem>>, vector<1x1x128xf32>
    %6 = vector.shape_cast %5 : vector<1x1x128xf32> to vector<1x128xf32>
    %c0_6 = arith.constant 0 : index
    %c0_7 = arith.constant 0 : index
    %7 = vector.load %arg6[%c0_6, %c0_7] : memref<8x128xf32, #tpu.memory_space<vmem>>, vector<8x128xf32>
    %c0_8 = arith.constant 0 : index
    %c0_9 = arith.constant 0 : index
    %c0_10 = arith.constant 0 : index
    %c0_11 = arith.constant 0 : index
    %8 = vector.load %arg2[%c0_8, %c0_9, %c0_10, %c0_11] : memref<1x8x8x384xf32, #tpu.memory_space<vmem>>, vector<1x1x8x384xf32>
    %9 = vector.shape_cast %8 : vector<1x1x8x384xf32> to vector<8x384xf32>
    %10 = arith.truncf %7 : vector<8x128xf32> to vector<8x128xbf16>
    %cst = arith.constant dense<0.000000e+00> : vector<8x384xf32>
    %11 = tpu.matmul %10, %4, %cst {dimension_numbers = #tpu.dot_dimension_numbers<[1], [0], [0], [1], [0, 0, 1, 1], [], []>} : vector<8x128xbf16>, vector<128x384xbf16>, vector<8x384xf32> -> vector<8x384xf32>
    %12 = vector.extract_strided_slice %9 {offsets = [0, 0], sizes = [8, 128], strides = [1, 1]} : vector<8x384xf32> to vector<8x128xf32>
    %13 = vector.extract_strided_slice %9 {offsets = [0, 128], sizes = [8, 128], strides = [1, 1]} : vector<8x384xf32> to vector<8x128xf32>
    %14 = vector.extract_strided_slice %9 {offsets = [0, 256], sizes = [8, 128], strides = [1, 1]} : vector<8x384xf32> to vector<8x128xf32>
    %15 = vector.extract_strided_slice %11 {offsets = [0, 0], sizes = [8, 128], strides = [1, 1]} : vector<8x384xf32> to vector<8x128xf32>
    %16 = vector.extract_strided_slice %11 {offsets = [0, 128], sizes = [8, 128], strides = [1, 1]} : vector<8x384xf32> to vector<8x128xf32>
    %17 = vector.extract_strided_slice %11 {offsets = [0, 256], sizes = [8, 128], strides = [1, 1]} : vector<8x384xf32> to vector<8x128xf32>
    %18 = arith.addf %12, %15 : vector<8x128xf32>
    %19 = arith.negf %18 : vector<8x128xf32>
    %20 = math.exp %19 : vector<8x128xf32>
    %cst_12 = arith.constant 1.000000e+00 : f32
    %21 = vector.broadcast %cst_12 : f32 to vector<8x128xf32>
    %22 = arith.addf %21, %20 : vector<8x128xf32>
    %23 = arith.divf %21, %22 : vector<8x128xf32>
    %24 = arith.addf %13, %16 : vector<8x128xf32>
    %25 = arith.negf %24 : vector<8x128xf32>
    %26 = math.exp %25 : vector<8x128xf32>
    %cst_13 = arith.constant 1.000000e+00 : f32
    %27 = vector.broadcast %cst_13 : f32 to vector<8x128xf32>
    %28 = arith.addf %27, %26 : vector<8x128xf32>
    %29 = arith.divf %27, %28 : vector<8x128xf32>
    %30 = vector.broadcast %6 : vector<1x128xf32> to vector<8x128xf32>
    %31 = arith.addf %17, %30 : vector<8x128xf32>
    %32 = arith.mulf %23, %31 : vector<8x128xf32>
    %33 = arith.addf %14, %32 : vector<8x128xf32>
    %34 = math.tanh %33 : vector<8x128xf32>
    %cst_14 = arith.constant 1.000000e+00 : f32
    %35 = vector.broadcast %cst_14 : f32 to vector<8x128xf32>
    %36 = arith.subf %35, %29 : vector<8x128xf32>
    %37 = arith.mulf %36, %34 : vector<8x128xf32>
    %38 = arith.mulf %29, %7 : vector<8x128xf32>
    %39 = arith.addf %37, %38 : vector<8x128xf32>
    %c0_15 = arith.constant 0 : index
    %c0_16 = arith.constant 0 : index
    %c0_17 = arith.constant 0 : index
    %c0_18 = arith.constant 0 : index
    %40 = vector.load %arg5[%c0_15, %c0_16, %c0_17, %c0_18] : memref<1x8x8x128xf32, #tpu.memory_space<vmem>>, vector<1x1x8x128xf32>
    %41 = vector.shape_cast %40 : vector<1x1x8x128xf32> to vector<8x128xf32>
    %42 = vector.shape_cast %39 : vector<8x128xf32> to vector<1x1x8x128xf32>
    tpu.vector_store %arg5[%c0_15, %c0_16, %c0_17, %c0_18], %42 {strides = array<i32>} : memref<1x8x8x128xf32, #tpu.memory_space<vmem>>, vector<1x1x8x128xf32>,
    %c0_19 = arith.constant 0 : index
    %c1 = arith.constant 1 : index
    %c0_20 = arith.constant 0 : index
    %c0_21 = arith.constant 0 : index
    %43 = vector.load %arg2[%c0_19, %c1, %c0_20, %c0_21] : memref<1x8x8x384xf32, #tpu.memory_space<vmem>>, vector<1x1x8x384xf32>
    %44 = vector.shape_cast %43 : vector<1x1x8x384xf32> to vector<8x384xf32>
    %45 = arith.truncf %39 : vector<8x128xf32> to vector<8x128xbf16>
    %cst_22 = arith.constant dense<0.000000e+00> : vector<8x384xf32>
    %46 = tpu.matmul %45, %4, %cst_22 {dimension_numbers = #tpu.dot_dimension_numbers<[1], [0], [0], [1], [0, 0, 1, 1], [], []>} : vector<8x128xbf16>, vector<128x384xbf16>, vector<8x384xf32> -> vector<8x384xf32>
    %47 = vector.extract_strided_slice %44 {offsets = [0, 0], sizes = [8, 128], strides = [1, 1]} : vector<8x384xf32> to vector<8x128xf32>
    %48 = vector.extract_strided_slice %44 {offsets = [0, 128], sizes = [8, 128], strides = [1, 1]} : vector<8x384xf32> to vector<8x128xf32>
    %49 = vector.extract_strided_slice %44 {offsets = [0, 256], sizes = [8, 128], strides = [1, 1]} : vector<8x384xf32> to vector<8x128xf32>
    %50 = vector.extract_strided_slice %46 {offsets = [0, 0], sizes = [8, 128], strides = [1, 1]} : vector<8x384xf32> to vector<8x128xf32>
    %51 = vector.extract_strided_slice %46 {offsets = [0, 128], sizes = [8, 128], strides = [1, 1]} : vector<8x384xf32> to vector<8x128xf32>
    %52 = vector.extract_strided_slice %46 {offsets = [0, 256], sizes = [8, 128], strides = [1, 1]} : vector<8x384xf32> to vector<8x128xf32>
    %53 = arith.addf %47, %50 : vector<8x128xf32>
    %54 = arith.negf %53 : vector<8x128xf32>
    %55 = math.exp %54 : vector<8x128xf32>
    %cst_23 = arith.constant 1.000000e+00 : f32
    %56 = vector.broadcast %cst_23 : f32 to vector<8x128xf32>
    %57 = arith.addf %56, %55 : vector<8x128xf32>
    %58 = arith.divf %56, %57 : vector<8x128xf32>
    %59 = arith.addf %48, %51 : vector<8x128xf32>
    %60 = arith.negf %59 : vector<8x128xf32>
    %61 = math.exp %60 : vector<8x128xf32>
    %cst_24 = arith.constant 1.000000e+00 : f32
    %62 = vector.broadcast %cst_24 : f32 to vector<8x128xf32>
    %63 = arith.addf %62, %61 : vector<8x128xf32>
    %64 = arith.divf %62, %63 : vector<8x128xf32>
    %65 = vector.broadcast %6 : vector<1x128xf32> to vector<8x128xf32>
    %66 = arith.addf %52, %65 : vector<8x128xf32>
    %67 = arith.mulf %58, %66 : vector<8x128xf32>
    %68 = arith.addf %49, %67 : vector<8x128xf32>
    %69 = math.tanh %68 : vector<8x128xf32>
    %cst_25 = arith.constant 1.000000e+00 : f32
    %70 = vector.broadcast %cst_25 : f32 to vector<8x128xf32>
    %71 = arith.subf %70, %64 : vector<8x128xf32>
    %72 = arith.mulf %71, %69 : vector<8x128xf32>
    %73 = arith.mulf %64, %39 : vector<8x128xf32>
    %74 = arith.addf %72, %73 : vector<8x128xf32>
    %c0_26 = arith.constant 0 : index
    %c1_27 = arith.constant 1 : index
    %c0_28 = arith.constant 0 : index
    %c0_29 = arith.constant 0 : index
    %75 = vector.load %arg5[%c0_26, %c1_27, %c0_28, %c0_29] : memref<1x8x8x128xf32, #tpu.memory_space<vmem>>, vector<1x1x8x128xf32>
    %76 = vector.shape_cast %75 : vector<1x1x8x128xf32> to vector<8x128xf32>
    %77 = vector.shape_cast %74 : vector<8x128xf32> to vector<1x1x8x128xf32>
    tpu.vector_store %arg5[%c0_26, %c1_27, %c0_28, %c0_29], %77 {strides = array<i32>} : memref<1x8x8x128xf32, #tpu.memory_space<vmem>>, vector<1x1x8x128xf32>,
    %c0_30 = arith.constant 0 : index
    %c2 = arith.constant 2 : index
    %c0_31 = arith.constant 0 : index
    %c0_32 = arith.constant 0 : index
    %78 = vector.load %arg2[%c0_30, %c2, %c0_31, %c0_32] : memref<1x8x8x384xf32, #tpu.memory_space<vmem>>, vector<1x1x8x384xf32>
    %79 = vector.shape_cast %78 : vector<1x1x8x384xf32> to vector<8x384xf32>
    %80 = arith.truncf %74 : vector<8x128xf32> to vector<8x128xbf16>
    %cst_33 = arith.constant dense<0.000000e+00> : vector<8x384xf32>
    %81 = tpu.matmul %80, %4, %cst_33 {dimension_numbers = #tpu.dot_dimension_numbers<[1], [0], [0], [1], [0, 0, 1, 1], [], []>} : vector<8x128xbf16>, vector<128x384xbf16>, vector<8x384xf32> -> vector<8x384xf32>
    %82 = vector.extract_strided_slice %79 {offsets = [0, 0], sizes = [8, 128], strides = [1, 1]} : vector<8x384xf32> to vector<8x128xf32>
    %83 = vector.extract_strided_slice %79 {offsets = [0, 128], sizes = [8, 128], strides = [1, 1]} : vector<8x384xf32> to vector<8x128xf32>
    %84 = vector.extract_strided_slice %79 {offsets = [0, 256], sizes = [8, 128], strides = [1, 1]} : vector<8x384xf32> to vector<8x128xf32>
    %85 = vector.extract_strided_slice %81 {offsets = [0, 0], sizes = [8, 128], strides = [1, 1]} : vector<8x384xf32> to vector<8x128xf32>
    %86 = vector.extract_strided_slice %81 {offsets = [0, 128], sizes = [8, 128], strides = [1, 1]} : vector<8x384xf32> to vector<8x128xf32>
    %87 = vector.extract_strided_slice %81 {offsets = [0, 256], sizes = [8, 128], strides = [1, 1]} : vector<8x384xf32> to vector<8x128xf32>
    %88 = arith.addf %82, %85 : vector<8x128xf32>
    %89 = arith.negf %88 : vector<8x128xf32>
    %90 = math.exp %89 : vector<8x128xf32>
    %cst_34 = arith.constant 1.000000e+00 : f32
    %91 = vector.broadcast %cst_34 : f32 to vector<8x128xf32>
    %92 = arith.addf %91, %90 : vector<8x128xf32>
    %93 = arith.divf %91, %92 : vector<8x128xf32>
    %94 = arith.addf %83, %86 : vector<8x128xf32>
    %95 = arith.negf %94 : vector<8x128xf32>
    %96 = math.exp %95 : vector<8x128xf32>
    %cst_35 = arith.constant 1.000000e+00 : f32
    %97 = vector.broadcast %cst_35 : f32 to vector<8x128xf32>
    %98 = arith.addf %97, %96 : vector<8x128xf32>
    %99 = arith.divf %97, %98 : vector<8x128xf32>
    %100 = vector.broadcast %6 : vector<1x128xf32> to vector<8x128xf32>
    %101 = arith.addf %87, %100 : vector<8x128xf32>
    %102 = arith.mulf %93, %101 : vector<8x128xf32>
    %103 = arith.addf %84, %102 : vector<8x128xf32>
    %104 = math.tanh %103 : vector<8x128xf32>
    %cst_36 = arith.constant 1.000000e+00 : f32
    %105 = vector.broadcast %cst_36 : f32 to vector<8x128xf32>
    %106 = arith.subf %105, %99 : vector<8x128xf32>
    %107 = arith.mulf %106, %104 : vector<8x128xf32>
    %108 = arith.mulf %99, %74 : vector<8x128xf32>
    %109 = arith.addf %107, %108 : vector<8x128xf32>
    %c0_37 = arith.constant 0 : index
    %c2_38 = arith.constant 2 : index
    %c0_39 = arith.constant 0 : index
    %c0_40 = arith.constant 0 : index
    %110 = vector.load %arg5[%c0_37, %c2_38, %c0_39, %c0_40] : memref<1x8x8x128xf32, #tpu.memory_space<vmem>>, vector<1x1x8x128xf32>
    %111 = vector.shape_cast %110 : vector<1x1x8x128xf32> to vector<8x128xf32>
    %112 = vector.shape_cast %109 : vector<8x128xf32> to vector<1x1x8x128xf32>
    tpu.vector_store %arg5[%c0_37, %c2_38, %c0_39, %c0_40], %112 {strides = array<i32>} : memref<1x8x8x128xf32, #tpu.memory_space<vmem>>, vector<1x1x8x128xf32>,
    %c0_41 = arith.constant 0 : index
    %c3 = arith.constant 3 : index
    %c0_42 = arith.constant 0 : index
    %c0_43 = arith.constant 0 : index
    %113 = vector.load %arg2[%c0_41, %c3, %c0_42, %c0_43] : memref<1x8x8x384xf32, #tpu.memory_space<vmem>>, vector<1x1x8x384xf32>
    %114 = vector.shape_cast %113 : vector<1x1x8x384xf32> to vector<8x384xf32>
    %115 = arith.truncf %109 : vector<8x128xf32> to vector<8x128xbf16>
    %cst_44 = arith.constant dense<0.000000e+00> : vector<8x384xf32>
    %116 = tpu.matmul %115, %4, %cst_44 {dimension_numbers = #tpu.dot_dimension_numbers<[1], [0], [0], [1], [0, 0, 1, 1], [], []>} : vector<8x128xbf16>, vector<128x384xbf16>, vector<8x384xf32> -> vector<8x384xf32>
    %117 = vector.extract_strided_slice %114 {offsets = [0, 0], sizes = [8, 128], strides = [1, 1]} : vector<8x384xf32> to vector<8x128xf32>
    %118 = vector.extract_strided_slice %114 {offsets = [0, 128], sizes = [8, 128], strides = [1, 1]} : vector<8x384xf32> to vector<8x128xf32>
    %119 = vector.extract_strided_slice %114 {offsets = [0, 256], sizes = [8, 128], strides = [1, 1]} : vector<8x384xf32> to vector<8x128xf32>
    %120 = vector.extract_strided_slice %116 {offsets = [0, 0], sizes = [8, 128], strides = [1, 1]} : vector<8x384xf32> to vector<8x128xf32>
    %121 = vector.extract_strided_slice %116 {offsets = [0, 128], sizes = [8, 128], strides = [1, 1]} : vector<8x384xf32> to vector<8x128xf32>
    %122 = vector.extract_strided_slice %116 {offsets = [0, 256], sizes = [8, 128], strides = [1, 1]} : vector<8x384xf32> to vector<8x128xf32>
    %123 = arith.addf %117, %120 : vector<8x128xf32>
    %124 = arith.negf %123 : vector<8x128xf32>
    %125 = math.exp %124 : vector<8x128xf32>
    %cst_45 = arith.constant 1.000000e+00 : f32
    %126 = vector.broadcast %cst_45 : f32 to vector<8x128xf32>
    %127 = arith.addf %126, %125 : vector<8x128xf32>
    %128 = arith.divf %126, %127 : vector<8x128xf32>
    %129 = arith.addf %118, %121 : vector<8x128xf32>
    %130 = arith.negf %129 : vector<8x128xf32>
    %131 = math.exp %130 : vector<8x128xf32>
    %cst_46 = arith.constant 1.000000e+00 : f32
    %132 = vector.broadcast %cst_46 : f32 to vector<8x128xf32>
    %133 = arith.addf %132, %131 : vector<8x128xf32>
    %134 = arith.divf %132, %133 : vector<8x128xf32>
    %135 = vector.broadcast %6 : vector<1x128xf32> to vector<8x128xf32>
    %136 = arith.addf %122, %135 : vector<8x128xf32>
    %137 = arith.mulf %128, %136 : vector<8x128xf32>
    %138 = arith.addf %119, %137 : vector<8x128xf32>
    %139 = math.tanh %138 : vector<8x128xf32>
    %cst_47 = arith.constant 1.000000e+00 : f32
    %140 = vector.broadcast %cst_47 : f32 to vector<8x128xf32>
    %141 = arith.subf %140, %134 : vector<8x128xf32>
    %142 = arith.mulf %141, %139 : vector<8x128xf32>
    %143 = arith.mulf %134, %109 : vector<8x128xf32>
    %144 = arith.addf %142, %143 : vector<8x128xf32>
    %c0_48 = arith.constant 0 : index
    %c3_49 = arith.constant 3 : index
    %c0_50 = arith.constant 0 : index
    %c0_51 = arith.constant 0 : index
    %145 = vector.load %arg5[%c0_48, %c3_49, %c0_50, %c0_51] : memref<1x8x8x128xf32, #tpu.memory_space<vmem>>, vector<1x1x8x128xf32>
    %146 = vector.shape_cast %145 : vector<1x1x8x128xf32> to vector<8x128xf32>
    %147 = vector.shape_cast %144 : vector<8x128xf32> to vector<1x1x8x128xf32>
    tpu.vector_store %arg5[%c0_48, %c3_49, %c0_50, %c0_51], %147 {strides = array<i32>} : memref<1x8x8x128xf32, #tpu.memory_space<vmem>>, vector<1x1x8x128xf32>,
    %c0_52 = arith.constant 0 : index
    %c4 = arith.constant 4 : index
    %c0_53 = arith.constant 0 : index
    %c0_54 = arith.constant 0 : index
    %148 = vector.load %arg2[%c0_52, %c4, %c0_53, %c0_54] : memref<1x8x8x384xf32, #tpu.memory_space<vmem>>, vector<1x1x8x384xf32>
    %149 = vector.shape_cast %148 : vector<1x1x8x384xf32> to vector<8x384xf32>
    %150 = arith.truncf %144 : vector<8x128xf32> to vector<8x128xbf16>
    %cst_55 = arith.constant dense<0.000000e+00> : vector<8x384xf32>
    %151 = tpu.matmul %150, %4, %cst_55 {dimension_numbers = #tpu.dot_dimension_numbers<[1], [0], [0], [1], [0, 0, 1, 1], [], []>} : vector<8x128xbf16>, vector<128x384xbf16>, vector<8x384xf32> -> vector<8x384xf32>
    %152 = vector.extract_strided_slice %149 {offsets = [0, 0], sizes = [8, 128], strides = [1, 1]} : vector<8x384xf32> to vector<8x128xf32>
    %153 = vector.extract_strided_slice %149 {offsets = [0, 128], sizes = [8, 128], strides = [1, 1]} : vector<8x384xf32> to vector<8x128xf32>
    %154 = vector.extract_strided_slice %149 {offsets = [0, 256], sizes = [8, 128], strides = [1, 1]} : vector<8x384xf32> to vector<8x128xf32>
    %155 = vector.extract_strided_slice %151 {offsets = [0, 0], sizes = [8, 128], strides = [1, 1]} : vector<8x384xf32> to vector<8x128xf32>
    %156 = vector.extract_strided_slice %151 {offsets = [0, 128], sizes = [8, 128], strides = [1, 1]} : vector<8x384xf32> to vector<8x128xf32>
    %157 = vector.extract_strided_slice %151 {offsets = [0, 256], sizes = [8, 128], strides = [1, 1]} : vector<8x384xf32> to vector<8x128xf32>
    %158 = arith.addf %152, %155 : vector<8x128xf32>
    %159 = arith.negf %158 : vector<8x128xf32>
    %160 = math.exp %159 : vector<8x128xf32>
    %cst_56 = arith.constant 1.000000e+00 : f32
    %161 = vector.broadcast %cst_56 : f32 to vector<8x128xf32>
    %162 = arith.addf %161, %160 : vector<8x128xf32>
    %163 = arith.divf %161, %162 : vector<8x128xf32>
    %164 = arith.addf %153, %156 : vector<8x128xf32>
    %165 = arith.negf %164 : vector<8x128xf32>
    %166 = math.exp %165 : vector<8x128xf32>
    %cst_57 = arith.constant 1.000000e+00 : f32
    %167 = vector.broadcast %cst_57 : f32 to vector<8x128xf32>
    %168 = arith.addf %167, %166 : vector<8x128xf32>
    %169 = arith.divf %167, %168 : vector<8x128xf32>
    %170 = vector.broadcast %6 : vector<1x128xf32> to vector<8x128xf32>
    %171 = arith.addf %157, %170 : vector<8x128xf32>
    %172 = arith.mulf %163, %171 : vector<8x128xf32>
    %173 = arith.addf %154, %172 : vector<8x128xf32>
    %174 = math.tanh %173 : vector<8x128xf32>
    %cst_58 = arith.constant 1.000000e+00 : f32
    %175 = vector.broadcast %cst_58 : f32 to vector<8x128xf32>
    %176 = arith.subf %175, %169 : vector<8x128xf32>
    %177 = arith.mulf %176, %174 : vector<8x128xf32>
    %178 = arith.mulf %169, %144 : vector<8x128xf32>
    %179 = arith.addf %177, %178 : vector<8x128xf32>
    %c0_59 = arith.constant 0 : index
    %c4_60 = arith.constant 4 : index
    %c0_61 = arith.constant 0 : index
    %c0_62 = arith.constant 0 : index
    %180 = vector.load %arg5[%c0_59, %c4_60, %c0_61, %c0_62] : memref<1x8x8x128xf32, #tpu.memory_space<vmem>>, vector<1x1x8x128xf32>
    %181 = vector.shape_cast %180 : vector<1x1x8x128xf32> to vector<8x128xf32>
    %182 = vector.shape_cast %179 : vector<8x128xf32> to vector<1x1x8x128xf32>
    tpu.vector_store %arg5[%c0_59, %c4_60, %c0_61, %c0_62], %182 {strides = array<i32>} : memref<1x8x8x128xf32, #tpu.memory_space<vmem>>, vector<1x1x8x128xf32>,
    %c0_63 = arith.constant 0 : index
    %c5 = arith.constant 5 : index
    %c0_64 = arith.constant 0 : index
    %c0_65 = arith.constant 0 : index
    %183 = vector.load %arg2[%c0_63, %c5, %c0_64, %c0_65] : memref<1x8x8x384xf32, #tpu.memory_space<vmem>>, vector<1x1x8x384xf32>
    %184 = vector.shape_cast %183 : vector<1x1x8x384xf32> to vector<8x384xf32>
    %185 = arith.truncf %179 : vector<8x128xf32> to vector<8x128xbf16>
    %cst_66 = arith.constant dense<0.000000e+00> : vector<8x384xf32>
    %186 = tpu.matmul %185, %4, %cst_66 {dimension_numbers = #tpu.dot_dimension_numbers<[1], [0], [0], [1], [0, 0, 1, 1], [], []>} : vector<8x128xbf16>, vector<128x384xbf16>, vector<8x384xf32> -> vector<8x384xf32>
    %187 = vector.extract_strided_slice %184 {offsets = [0, 0], sizes = [8, 128], strides = [1, 1]} : vector<8x384xf32> to vector<8x128xf32>
    %188 = vector.extract_strided_slice %184 {offsets = [0, 128], sizes = [8, 128], strides = [1, 1]} : vector<8x384xf32> to vector<8x128xf32>
    %189 = vector.extract_strided_slice %184 {offsets = [0, 256], sizes = [8, 128], strides = [1, 1]} : vector<8x384xf32> to vector<8x128xf32>
    %190 = vector.extract_strided_slice %186 {offsets = [0, 0], sizes = [8, 128], strides = [1, 1]} : vector<8x384xf32> to vector<8x128xf32>
    %191 = vector.extract_strided_slice %186 {offsets = [0, 128], sizes = [8, 128], strides = [1, 1]} : vector<8x384xf32> to vector<8x128xf32>
    %192 = vector.extract_strided_slice %186 {offsets = [0, 256], sizes = [8, 128], strides = [1, 1]} : vector<8x384xf32> to vector<8x128xf32>
    %193 = arith.addf %187, %190 : vector<8x128xf32>
    %194 = arith.negf %193 : vector<8x128xf32>
    %195 = math.exp %194 : vector<8x128xf32>
    %cst_67 = arith.constant 1.000000e+00 : f32
    %196 = vector.broadcast %cst_67 : f32 to vector<8x128xf32>
    %197 = arith.addf %196, %195 : vector<8x128xf32>
    %198 = arith.divf %196, %197 : vector<8x128xf32>
    %199 = arith.addf %188, %191 : vector<8x128xf32>
    %200 = arith.negf %199 : vector<8x128xf32>
    %201 = math.exp %200 : vector<8x128xf32>
    %cst_68 = arith.constant 1.000000e+00 : f32
    %202 = vector.broadcast %cst_68 : f32 to vector<8x128xf32>
    %203 = arith.addf %202, %201 : vector<8x128xf32>
    %204 = arith.divf %202, %203 : vector<8x128xf32>
    %205 = vector.broadcast %6 : vector<1x128xf32> to vector<8x128xf32>
    %206 = arith.addf %192, %205 : vector<8x128xf32>
    %207 = arith.mulf %198, %206 : vector<8x128xf32>
    %208 = arith.addf %189, %207 : vector<8x128xf32>
    %209 = math.tanh %208 : vector<8x128xf32>
    %cst_69 = arith.constant 1.000000e+00 : f32
    %210 = vector.broadcast %cst_69 : f32 to vector<8x128xf32>
    %211 = arith.subf %210, %204 : vector<8x128xf32>
    %212 = arith.mulf %211, %209 : vector<8x128xf32>
    %213 = arith.mulf %204, %179 : vector<8x128xf32>
    %214 = arith.addf %212, %213 : vector<8x128xf32>
    %c0_70 = arith.constant 0 : index
    %c5_71 = arith.constant 5 : index
    %c0_72 = arith.constant 0 : index
    %c0_73 = arith.constant 0 : index
    %215 = vector.load %arg5[%c0_70, %c5_71, %c0_72, %c0_73] : memref<1x8x8x128xf32, #tpu.memory_space<vmem>>, vector<1x1x8x128xf32>
    %216 = vector.shape_cast %215 : vector<1x1x8x128xf32> to vector<8x128xf32>
    %217 = vector.shape_cast %214 : vector<8x128xf32> to vector<1x1x8x128xf32>
    tpu.vector_store %arg5[%c0_70, %c5_71, %c0_72, %c0_73], %217 {strides = array<i32>} : memref<1x8x8x128xf32, #tpu.memory_space<vmem>>, vector<1x1x8x128xf32>,
    %c0_74 = arith.constant 0 : index
    %c6 = arith.constant 6 : index
    %c0_75 = arith.constant 0 : index
    %c0_76 = arith.constant 0 : index
    %218 = vector.load %arg2[%c0_74, %c6, %c0_75, %c0_76] : memref<1x8x8x384xf32, #tpu.memory_space<vmem>>, vector<1x1x8x384xf32>
    %219 = vector.shape_cast %218 : vector<1x1x8x384xf32> to vector<8x384xf32>
    %220 = arith.truncf %214 : vector<8x128xf32> to vector<8x128xbf16>
    %cst_77 = arith.constant dense<0.000000e+00> : vector<8x384xf32>
    %221 = tpu.matmul %220, %4, %cst_77 {dimension_numbers = #tpu.dot_dimension_numbers<[1], [0], [0], [1], [0, 0, 1, 1], [], []>} : vector<8x128xbf16>, vector<128x384xbf16>, vector<8x384xf32> -> vector<8x384xf32>
    %222 = vector.extract_strided_slice %219 {offsets = [0, 0], sizes = [8, 128], strides = [1, 1]} : vector<8x384xf32> to vector<8x128xf32>
    %223 = vector.extract_strided_slice %219 {offsets = [0, 128], sizes = [8, 128], strides = [1, 1]} : vector<8x384xf32> to vector<8x128xf32>
    %224 = vector.extract_strided_slice %219 {offsets = [0, 256], sizes = [8, 128], strides = [1, 1]} : vector<8x384xf32> to vector<8x128xf32>
    %225 = vector.extract_strided_slice %221 {offsets = [0, 0], sizes = [8, 128], strides = [1, 1]} : vector<8x384xf32> to vector<8x128xf32>
    %226 = vector.extract_strided_slice %221 {offsets = [0, 128], sizes = [8, 128], strides = [1, 1]} : vector<8x384xf32> to vector<8x128xf32>
    %227 = vector.extract_strided_slice %221 {offsets = [0, 256], sizes = [8, 128], strides = [1, 1]} : vector<8x384xf32> to vector<8x128xf32>
    %228 = arith.addf %222, %225 : vector<8x128xf32>
    %229 = arith.negf %228 : vector<8x128xf32>
    %230 = math.exp %229 : vector<8x128xf32>
    %cst_78 = arith.constant 1.000000e+00 : f32
    %231 = vector.broadcast %cst_78 : f32 to vector<8x128xf32>
    %232 = arith.addf %231, %230 : vector<8x128xf32>
    %233 = arith.divf %231, %232 : vector<8x128xf32>
    %234 = arith.addf %223, %226 : vector<8x128xf32>
    %235 = arith.negf %234 : vector<8x128xf32>
    %236 = math.exp %235 : vector<8x128xf32>
    %cst_79 = arith.constant 1.000000e+00 : f32
    %237 = vector.broadcast %cst_79 : f32 to vector<8x128xf32>
    %238 = arith.addf %237, %236 : vector<8x128xf32>
    %239 = arith.divf %237, %238 : vector<8x128xf32>
    %240 = vector.broadcast %6 : vector<1x128xf32> to vector<8x128xf32>
    %241 = arith.addf %227, %240 : vector<8x128xf32>
    %242 = arith.mulf %233, %241 : vector<8x128xf32>
    %243 = arith.addf %224, %242 : vector<8x128xf32>
    %244 = math.tanh %243 : vector<8x128xf32>
    %cst_80 = arith.constant 1.000000e+00 : f32
    %245 = vector.broadcast %cst_80 : f32 to vector<8x128xf32>
    %246 = arith.subf %245, %239 : vector<8x128xf32>
    %247 = arith.mulf %246, %244 : vector<8x128xf32>
    %248 = arith.mulf %239, %214 : vector<8x128xf32>
    %249 = arith.addf %247, %248 : vector<8x128xf32>
    %c0_81 = arith.constant 0 : index
    %c6_82 = arith.constant 6 : index
    %c0_83 = arith.constant 0 : index
    %c0_84 = arith.constant 0 : index
    %250 = vector.load %arg5[%c0_81, %c6_82, %c0_83, %c0_84] : memref<1x8x8x128xf32, #tpu.memory_space<vmem>>, vector<1x1x8x128xf32>
    %251 = vector.shape_cast %250 : vector<1x1x8x128xf32> to vector<8x128xf32>
    %252 = vector.shape_cast %249 : vector<8x128xf32> to vector<1x1x8x128xf32>
    tpu.vector_store %arg5[%c0_81, %c6_82, %c0_83, %c0_84], %252 {strides = array<i32>} : memref<1x8x8x128xf32, #tpu.memory_space<vmem>>, vector<1x1x8x128xf32>,
    %c0_85 = arith.constant 0 : index
    %c7 = arith.constant 7 : index
    %c0_86 = arith.constant 0 : index
    %c0_87 = arith.constant 0 : index
    %253 = vector.load %arg2[%c0_85, %c7, %c0_86, %c0_87] : memref<1x8x8x384xf32, #tpu.memory_space<vmem>>, vector<1x1x8x384xf32>
    %254 = vector.shape_cast %253 : vector<1x1x8x384xf32> to vector<8x384xf32>
    %255 = arith.truncf %249 : vector<8x128xf32> to vector<8x128xbf16>
    %cst_88 = arith.constant dense<0.000000e+00> : vector<8x384xf32>
    %256 = tpu.matmul %255, %4, %cst_88 {dimension_numbers = #tpu.dot_dimension_numbers<[1], [0], [0], [1], [0, 0, 1, 1], [], []>} : vector<8x128xbf16>, vector<128x384xbf16>, vector<8x384xf32> -> vector<8x384xf32>
    %257 = vector.extract_strided_slice %254 {offsets = [0, 0], sizes = [8, 128], strides = [1, 1]} : vector<8x384xf32> to vector<8x128xf32>
    %258 = vector.extract_strided_slice %254 {offsets = [0, 128], sizes = [8, 128], strides = [1, 1]} : vector<8x384xf32> to vector<8x128xf32>
    %259 = vector.extract_strided_slice %254 {offsets = [0, 256], sizes = [8, 128], strides = [1, 1]} : vector<8x384xf32> to vector<8x128xf32>
    %260 = vector.extract_strided_slice %256 {offsets = [0, 0], sizes = [8, 128], strides = [1, 1]} : vector<8x384xf32> to vector<8x128xf32>
    %261 = vector.extract_strided_slice %256 {offsets = [0, 128], sizes = [8, 128], strides = [1, 1]} : vector<8x384xf32> to vector<8x128xf32>
    %262 = vector.extract_strided_slice %256 {offsets = [0, 256], sizes = [8, 128], strides = [1, 1]} : vector<8x384xf32> to vector<8x128xf32>
    %263 = arith.addf %257, %260 : vector<8x128xf32>
    %264 = arith.negf %263 : vector<8x128xf32>
    %265 = math.exp %264 : vector<8x128xf32>
    %cst_89 = arith.constant 1.000000e+00 : f32
    %266 = vector.broadcast %cst_89 : f32 to vector<8x128xf32>
    %267 = arith.addf %266, %265 : vector<8x128xf32>
    %268 = arith.divf %266, %267 : vector<8x128xf32>
    %269 = arith.addf %258, %261 : vector<8x128xf32>
    %270 = arith.negf %269 : vector<8x128xf32>
    %271 = math.exp %270 : vector<8x128xf32>
    %cst_90 = arith.constant 1.000000e+00 : f32
    %272 = vector.broadcast %cst_90 : f32 to vector<8x128xf32>
    %273 = arith.addf %272, %271 : vector<8x128xf32>
    %274 = arith.divf %272, %273 : vector<8x128xf32>
    %275 = vector.broadcast %6 : vector<1x128xf32> to vector<8x128xf32>
    %276 = arith.addf %262, %275 : vector<8x128xf32>
    %277 = arith.mulf %268, %276 : vector<8x128xf32>
    %278 = arith.addf %259, %277 : vector<8x128xf32>
    %279 = math.tanh %278 : vector<8x128xf32>
    %cst_91 = arith.constant 1.000000e+00 : f32
    %280 = vector.broadcast %cst_91 : f32 to vector<8x128xf32>
    %281 = arith.subf %280, %274 : vector<8x128xf32>
    %282 = arith.mulf %281, %279 : vector<8x128xf32>
    %283 = arith.mulf %274, %249 : vector<8x128xf32>
    %284 = arith.addf %282, %283 : vector<8x128xf32>
    %c0_92 = arith.constant 0 : index
    %c7_93 = arith.constant 7 : index
    %c0_94 = arith.constant 0 : index
    %c0_95 = arith.constant 0 : index
    %285 = vector.load %arg5[%c0_92, %c7_93, %c0_94, %c0_95] : memref<1x8x8x128xf32, #tpu.memory_space<vmem>>, vector<1x1x8x128xf32>
    %286 = vector.shape_cast %285 : vector<1x1x8x128xf32> to vector<8x128xf32>
    %287 = vector.shape_cast %284 : vector<8x128xf32> to vector<1x1x8x128xf32>
    tpu.vector_store %arg5[%c0_92, %c7_93, %c0_94, %c0_95], %287 {strides = array<i32>} : memref<1x8x8x128xf32, #tpu.memory_space<vmem>>, vector<1x1x8x128xf32>,
    %c0_96 = arith.constant 0 : index
    %c0_97 = arith.constant 0 : index
    %288 = vector.load %arg6[%c0_96, %c0_97] : memref<8x128xf32, #tpu.memory_space<vmem>>, vector<8x128xf32>
    tpu.vector_store %arg6[%c0_96, %c0_97], %284 {strides = array<i32>} : memref<8x128xf32, #tpu.memory_space<vmem>>, vector<8x128xf32>,
    return
  }
  func.func @transform_0(%arg0: i32, %arg1: i32) -> (i32, i32, i32, i32) {
    %c0_i32 = arith.constant 0 : i32
    %c0_i32_0 = arith.constant 0 : i32
    %c0_i32_1 = arith.constant 0 : i32
    return %arg0, %arg1, %c0_i32, %c0_i32_0 : i32, i32, i32, i32
  }
  func.func @transform_1(%arg0: i32, %arg1: i32) -> (i32, i32, i32) {
    %c0_i32 = arith.constant 0 : i32
    %c0_i32_0 = arith.constant 0 : i32
    %c0_i32_1 = arith.constant 0 : i32
    return %arg0, %c0_i32, %c0_i32_0 : i32, i32, i32
  }
  func.func @transform_2(%arg0: i32, %arg1: i32) -> (i32, i32, i32) {
    %c0_i32 = arith.constant 0 : i32
    %c0_i32_0 = arith.constant 0 : i32
    %c0_i32_1 = arith.constant 0 : i32
    return %arg0, %c0_i32, %c0_i32_0 : i32, i32, i32
  }
  func.func @transform_3(%arg0: i32, %arg1: i32) -> (i32, i32, i32, i32) {
    %c0_i32 = arith.constant 0 : i32
    %c0_i32_0 = arith.constant 0 : i32
    %c0_i32_1 = arith.constant 0 : i32
    return %arg0, %arg1, %c0_i32, %c0_i32_0 : i32, i32, i32, i32
  }
}

</mosaic_0001>

<llo_original>
// kernel: rnn_encoder_forward.2
$region0: #{rnn_encoder_forward.2}
  #allocation0 [shape = 'u32[]', space=smem, size = 0x4, offset = 0x4, fixed_abs, tag = 'smem constant byte address 0x4 - core index']
  #allocation1 [shape = 'u32[144,128]{1,0:T(1,128)}', space=vmem, size = 0x12000, scoped, tag = 'internal scratch']
  #allocation2 [shape = 'f32[8,128]{1,0:T(8,128)}', space=vmem, size = 0x1000, scoped, tag = 'scratch operand']
  %s0 = inlined_call_operand.vmem [shape: f32[2,8,8,384], index: 0, kind: input, shape index: {}]
  %s1 = inlined_call_operand.vmem [shape: bf16[2,128,384], index: 1, kind: input, shape index: {}]
  %s2 = inlined_call_operand.vmem [shape: f32[2,1,128], index: 2, kind: input, shape index: {}]
  %s3 = inlined_call_operand.vmem [shape: f32[2,8,8,128], index: 3, kind: output, shape index: {}]
  %s4 = sld [smem:[#allocation0]]
  $region49: #{rnn_encoder_forward.2} parent=0
    _
  %s6 = ssub.s32 1, %s4
  %s7 = scalar_select 0, %s6, %s4
  loop: start=0, step=1, limit=4
  $region2: #{rnn_encoder_forward.2} parent=0 // loop_pre_header
    _
  $region3: #{rnn_encoder_forward.2} parent=0 // loop_header
    %s9 = sphi 0, %s13
    %p10 = scmp.ge.s32.totalorder %s9, 4
    %s16 = sphi 0, %s28
    %s17 = sphi 0, %s24
    %s18 = sphi 0, %s16
    %s19 = sphi 0, %s17
    %s20 = sphi 0, %s18
    %s21 = sphi 0, %s19
    %s33 = sphi 0, %s35
    %s36 = sphi 0, %s33
    %s37 = sphi 0, %s36
    %s53 = sphi 0, %s37
    %s59 = sphi 0, %s61
    %s62 = sphi 0, %s59
    %s63 = sphi 0, %s62
    %s79 = sphi 0, %s63
    %s85 = sphi 0, %s87
    %s88 = sphi 0, %s85
    %s89 = sphi 0, %s88
    %s105 = sphi 0, %s89
    %s113 = sphi 0, %s115
    %s116 = sphi 0, %s113
    %s117 = sphi 0, %s116
    %s133 = sphi 0, %s117
  $region4: #{rnn_encoder_forward.2} parent=0 // loop_header_branch
    %12 = sbr.rel (%p10) target = $region8
  $region5: #{rnn_encoder_forward.2} parent=0 // loop_body
    %s14 = ssub.s32 %s9, 1
    %s15 = ssub.s32 %s9, 2
    %s22 = sadd.s32 1, %s17
    %p23 = scmp.ge.s32.totalorder %s22, 1
    %s24 = scalar_select %p23, 0, %s22
    %s25 = sadd.s32 1, %s16
    %s26 = scalar_select %p23, %s25, %s16
    %p27 = scmp.ge.s32.totalorder %s26, 2
    %s28 = scalar_select %p27, 0, %s26
    %s29 = ssub.s32 %s16, %s28
    %s30 = ssub.s32 %s17, %s24
    %s31 = sor.u32 %s29, %s30
    %p32 = scmp.eq.s32.totalorder %s31, 0
    %s34 = sadd.s32 %s33, 1
    %s35 = scalar_select %p32, %s33, %s34
    %p38 = pneg %p32
    %p39 = scmp.eq.s32.totalorder %s9, 1
    %p40 = por %p38, %p39
    %p41 = scmp.ne.s32.totalorder %s33, %s36
    %p42 = scmp.eq.s32.totalorder %s9, 0
    %p43 = por %p41, %p42
    %p44 = scmp.ne.s32.totalorder %s33, %s36
    %p45 = scmp.eq.s32.totalorder %s14, 1
    %p46 = por %p44, %p45
    %p47 = scmp.ne.s32.totalorder %s36, %s37
    %p48 = scmp.eq.s32.totalorder %s14, 0
    %p49 = por %p47, %p48
    %p50 = scmp.ne.s32.totalorder %s36, %s37
    %p51 = scmp.eq.s32.totalorder %s15, 1
    %p52 = por %p50, %p51
    %p54 = scmp.ne.s32.totalorder %s37, %s53
    %p55 = scmp.eq.s32.totalorder %s15, 0
    %p56 = por %p54, %p55
    %s57 = ssub.s32 %s16, %s28
    %p58 = scmp.eq.s32.totalorder %s57, 0
    %s60 = sadd.s32 %s59, 1
    %s61 = scalar_select %p58, %s59, %s60
    %p64 = pneg %p58
    %p65 = scmp.eq.s32.totalorder %s9, 1
    %p66 = por %p64, %p65
    %p67 = scmp.ne.s32.totalorder %s59, %s62
    %p68 = scmp.eq.s32.totalorder %s9, 0
    %p69 = por %p67, %p68
    %p70 = scmp.ne.s32.totalorder %s59, %s62
    %p71 = scmp.eq.s32.totalorder %s14, 1
    %p72 = por %p70, %p71
    %p73 = scmp.ne.s32.totalorder %s62, %s63
    %p74 = scmp.eq.s32.totalorder %s14, 0
    %p75 = por %p73, %p74
    %p76 = scmp.ne.s32.totalorder %s62, %s63
    %p77 = scmp.eq.s32.totalorder %s15, 1
    %p78 = por %p76, %p77
    %p80 = scmp.ne.s32.totalorder %s63, %s79
    %p81 = scmp.eq.s32.totalorder %s15, 0
    %p82 = por %p80, %p81
    %s83 = ssub.s32 %s16, %s28
    %p84 = scmp.eq.s32.totalorder %s83, 0
    %s86 = sadd.s32 %s85, 1
    %s87 = scalar_select %p84, %s85, %s86
    %p90 = pneg %p84
    %p91 = scmp.eq.s32.totalorder %s9, 1
    %p92 = por %p90, %p91
    %p93 = scmp.ne.s32.totalorder %s85, %s88
    %p94 = scmp.eq.s32.totalorder %s9, 0
    %p95 = por %p93, %p94
    %p96 = scmp.ne.s32.totalorder %s85, %s88
    %p97 = scmp.eq.s32.totalorder %s14, 1
    %p98 = por %p96, %p97
    %p99 = scmp.ne.s32.totalorder %s88, %s89
    %p100 = scmp.eq.s32.totalorder %s14, 0
    %p101 = por %p99, %p100
    %p102 = scmp.ne.s32.totalorder %s88, %s89
    %p103 = scmp.eq.s32.totalorder %s15, 1
    %p104 = por %p102, %p103
    %p106 = scmp.ne.s32.totalorder %s89, %s105
    %p107 = scmp.eq.s32.totalorder %s15, 0
    %p108 = por %p106, %p107
    %s109 = ssub.s32 %s16, %s28
    %s110 = ssub.s32 %s17, %s24
    %s111 = sor.u32 %s109, %s110
    %p112 = scmp.eq.s32.totalorder %s111, 0
    %s114 = sadd.s32 %s113, 1
    %s115 = scalar_select %p112, %s113, %s114
    %p118 = pneg %p112
    %p119 = scmp.eq.s32.totalorder %s9, 1
    %p120 = por %p118, %p119
    %p121 = scmp.ne.s32.totalorder %s113, %s116
    %p122 = scmp.eq.s32.totalorder %s9, 0
    %p123 = por %p121, %p122
    %p124 = scmp.ne.s32.totalorder %s113, %s116
    %p125 = scmp.eq.s32.totalorder %s14, 1
    %p126 = por %p124, %p125
    %p127 = scmp.ne.s32.totalorder %s116, %s117
    %p128 = scmp.eq.s32.totalorder %s14, 0
    %p129 = por %p127, %p128
    %p130 = scmp.ne.s32.totalorder %s116, %s117
    %p131 = scmp.eq.s32.totalorder %s15, 1
    %p132 = por %p130, %p131
    %p134 = scmp.ne.s32.totalorder %s117, %s133
    %p135 = scmp.eq.s32.totalorder %s15, 0
    %p136 = por %p134, %p135
    %p137 = scmp.le.s32.totalorder 1, %s9
    %p138 = scmp.lt.s32.totalorder %s9, 3
    %p139 = pnand %p137, %p138
    %p140 = pneg %p139
    // Predicated region
    $region9: #{rnn_encoder_forward.2} parent=5 // pred_check
      _
    $region10: #{rnn_encoder_forward.2} parent=5 // pred_check_branch
      %142 = sbr.rel (%p139) target = $region12
    $region11: #{rnn_encoder_forward.2} parent=5 // pred_region
      %s143 = ssub.s32 %s9, 1
    $region12: #{rnn_encoder_forward.2} parent=5 // pred_fallthru
      _
    %p144 = scmp.lt.s32.totalorder %s9, 2
    // Predicated region
    $region13: #{rnn_encoder_forward.2} parent=5 // pred_check
      %p145 = pneg %p144
    $region14: #{rnn_encoder_forward.2} parent=5 // pred_check_branch
      %147 = sbr.rel (%p145) target = $region16
    $region15: #{rnn_encoder_forward.2} parent=5 // pred_region
      // Predicated region
      $region17: #{rnn_encoder_forward.2} parent=15 // pred_check
        %p148 = pneg %p43
      $region18: #{rnn_encoder_forward.2} parent=15 // pred_check_branch
        %150 = sbr.rel (%p148) target = $region20
      $region19: #{rnn_encoder_forward.2} parent=15 // pred_region
        %s151 = smul.u32 8, %s17
        %p152 = scmp.lt.s32.totalorder %s16, 1
        %s153 = scalar_select %p152, %s16, 1
        %p154 = scmp.lt.s32.totalorder %s151, 7
        %s155 = scalar_select %p154, %s151, 7
        %s156 = smul.addr %s155, 3
        %s157 = smul.addr %s153, 24
        %s158 = sadd.s32 %s156, %s157
        %s159 = smul.addr %s158, 8
        %s160 = scalar_lea.vmem %s0, %s159
        %s161 = smul.u32 8, %s17
      $region20: #{rnn_encoder_forward.2} parent=15 // pred_fallthru
        _
      // Predicated region
      $region21: #{rnn_encoder_forward.2} parent=15 // pred_check
        %p162 = pneg %p69
      $region22: #{rnn_encoder_forward.2} parent=15 // pred_check_branch
        %164 = sbr.rel (%p162) target = $region24
      $region23: #{rnn_encoder_forward.2} parent=15 // pred_region
        %p165 = scmp.lt.s32.totalorder %s16, 1
        %s166 = scalar_select %p165, %s16, 1
        %s167 = smul.addr %s166, 48
        %s168 = smul.addr %s167, 4
        %s169 = scalar_lea.vmem %s1, %s168
      $region24: #{rnn_encoder_forward.2} parent=15 // pred_fallthru
        _
      // Predicated region
      $region25: #{rnn_encoder_forward.2} parent=15 // pred_check
        %p170 = pneg %p95
      $region26: #{rnn_encoder_forward.2} parent=15 // pred_check_branch
        %172 = sbr.rel (%p170) target = $region28
      $region27: #{rnn_encoder_forward.2} parent=15 // pred_region
        %p173 = scmp.lt.s32.totalorder %s16, 1
        %s174 = scalar_select %p173, %s16, 1
        %s175 = scalar_lea.vmem %s2, %s174
      $region28: #{rnn_encoder_forward.2} parent=15 // pred_fallthru
        _
    $region16: #{rnn_encoder_forward.2} parent=5 // pred_fallthru
      _
    %p176 = scmp.le.s32.totalorder 1, %s9
    %p177 = scmp.lt.s32.totalorder %s9, 3
    %p178 = pnand %p176, %p177
    %p179 = pneg %p178
    // Predicated region
    $region29: #{rnn_encoder_forward.2} parent=5 // pred_check
      _
    $region30: #{rnn_encoder_forward.2} parent=5 // pred_check_branch
      %181 = sbr.rel (%p178) target = $region32
    $region31: #{rnn_encoder_forward.2} parent=5 // pred_region
      %s182 = ssub.s32 %s9, 1
      %s183 = smul.u32 8, %s19
      %p184 = scmp.lt.s32.totalorder %s18, 1
      %s185 = scalar_select %p184, %s18, 1
      %p186 = scmp.lt.s32.totalorder %s183, 7
      %s187 = scalar_select %p186, %s183, 7
      %s188 = smul.addr %s187, 3
      %s189 = smul.addr %s185, 24
      %s190 = sadd.s32 %s188, %s189
      %s191 = smul.addr %s190, 8
      %s192 = scalar_lea.vmem %s0, %s191
      %p193 = pneg %p49
      %p194 = pneg %p46
      %p195 = scmp.lt.s32.totalorder %s18, 1
      %s196 = scalar_select %p195, %s18, 1
      %s197 = smul.addr %s196, 48
      %s198 = smul.addr %s197, 4
      %s199 = scalar_lea.vmem %s1, %s198
      %p200 = pneg %p75
      %p201 = pneg %p72
      %p202 = scmp.lt.s32.totalorder %s18, 1
      %s203 = scalar_select %p202, %s18, 1
      %s204 = scalar_lea.vmem %s2, %s203
      %p205 = pneg %p101
      %p206 = pneg %p98
      %p207 = pneg %p129
      %p208 = pneg %p126
      %s209 = smul.u32 8, %s19
      %p210 = scmp.lt.s32.totalorder %s18, 1
      %s211 = scalar_select %p210, %s18, 1
      %p212 = scmp.lt.s32.totalorder %s209, 7
      %s213 = scalar_select %p212, %s209, 7
      %s214 = smul.addr %s211, 8
      %s215 = sadd.s32 %s213, %s214
      %s216 = smul.addr %s215, 8
      %s217 = scalar_lea.vmem %s3, %s216
      %s218 = smul.u32 8, %s19
      %p219 = scmp.lt.s32.totalorder %s18, 1
      %s220 = scalar_select %p219, %s18, 1
      %p221 = scmp.lt.s32.totalorder %s218, 7
      %s222 = scalar_select %p221, %s218, 7
      %s223 = smul.addr %s222, 3
      %s224 = smul.addr %s220, 24
      %s225 = sadd.s32 %s223, %s224
      %s226 = smul.addr %s225, 8
      %s227 = scalar_lea.vmem %s0, %s226
      %s228 = smul.u32 8, %s19
      %p229 = scmp.lt.s32.totalorder %s18, 1
      %s230 = scalar_select %p229, %s18, 1
      %s231 = smul.addr %s230, 48
      %s232 = smul.addr %s231, 4
      %s233 = scalar_lea.vmem %s1, %s232
      %p234 = scmp.lt.s32.totalorder %s18, 1
      %s235 = scalar_select %p234, %s18, 1
      %s236 = scalar_lea.vmem %s2, %s235
      %s237 = smul.u32 8, %s19
      %p238 = scmp.lt.s32.totalorder %s18, 1
      %s239 = scalar_select %p238, %s18, 1
      %p240 = scmp.lt.s32.totalorder %s237, 7
      %s241 = scalar_select %p240, %s237, 7
      %s242 = smul.addr %s239, 8
      %s243 = sadd.s32 %s241, %s242
      %s244 = smul.addr %s243, 8
      %s245 = scalar_lea.vmem %s3, %s244
      %s246 = smul.u32 8, %s19
      %p248 = scmp.eq.s32.totalorder %s19, 0
      // Predicated region
      $region33: #{rnn_encoder_forward.2} parent=31 // pred_check
        %p249 = pneg %p248
      $region34: #{rnn_encoder_forward.2} parent=31 // pred_check_branch
        %251 = sbr.rel (%p249) target = $region36
      $region35: #{rnn_encoder_forward.2} parent=31 // pred_region
        %252 = vst [vmem:[#allocation2] sm:$0xff] 0.0
      $region36: #{rnn_encoder_forward.2} parent=31 // pred_fallthru
        _
      %v253 = vld [vmem:[%s233] sm:$0xff]
      %v254 = vld [vmem:[%s233 + $0x8] sm:$0xf]
      %v255 = vld [vmem:[%s233 + $0xc] sm:$0xff]
      %v256 = vld [vmem:[%s233 + $0x14] sm:$0xf]
      %v257 = vld [vmem:[%s233 + $0x18] sm:$0xff]
      %v258 = vld [vmem:[%s233 + $0x20] sm:$0xf]
      %v259 = vld [vmem:[%s233 + $0x24] sm:$0xff]
      %v260 = vld [vmem:[%s233 + $0x2c] sm:$0xf]
      %v261 = vld [vmem:[%s233 + $0x30] sm:$0xff]
      %v262 = vld [vmem:[%s233 + $0x38] sm:$0xf]
      %v263 = vld [vmem:[%s233 + $0x3c] sm:$0xff]
      %v264 = vld [vmem:[%s233 + $0x44] sm:$0xf]
      %v265 = vld [vmem:[%s233 + $0x48] sm:$0xff]
      %v266 = vld [vmem:[%s233 + $0x50] sm:$0xf]
      %v267 = vld [vmem:[%s233 + $0x54] sm:$0xff]
      %v268 = vld [vmem:[%s233 + $0x5c] sm:$0xf]
      %v269 = vld [vmem:[%s233 + $0x60] sm:$0xff]
      %v270 = vld [vmem:[%s233 + $0x68] sm:$0xf]
      %v271 = vld [vmem:[%s233 + $0x6c] sm:$0xff]
      %v272 = vld [vmem:[%s233 + $0x74] sm:$0xf]
      %v273 = vld [vmem:[%s233 + $0x78] sm:$0xff]
      %v274 = vld [vmem:[%s233 + $0x80] sm:$0xf]
      %v275 = vld [vmem:[%s233 + $0x84] sm:$0xff]
      %v276 = vld [vmem:[%s233 + $0x8c] sm:$0xf]
      %v277 = vld [vmem:[%s233 + $0x90] sm:$0xff]
      %v278 = vld [vmem:[%s233 + $0x98] sm:$0xf]
      %v279 = vld [vmem:[%s233 + $0x9c] sm:$0xff]
      %v280 = vld [vmem:[%s233 + $0xa4] sm:$0xf]
      %v281 = vld [vmem:[%s233 + $0xa8] sm:$0xff]
      %v282 = vld [vmem:[%s233 + $0xb0] sm:$0xf]
      %v283 = vld [vmem:[%s233 + $0xb4] sm:$0xff]
      %v284 = vld [vmem:[%s233 + $0xbc] sm:$0xf]
      %v285 = vld [vmem:[%s236] sm:$0x1]
      %v286 = vld [vmem:[#allocation2] sm:$0xff]
      %v287 = vld [vmem:[%s227] sm:$0xff]
      %v288 = vld [vmem:[%s227 + $0x8] sm:$0xff]
      %v289 = vld [vmem:[%s227 + $0x10] sm:$0xff]
      %v290 = vpack.c.bf16 %v286, %v286
      %v323 = vunpack.c.l.b16 %v253
      %v324 = vunpack.c.h.b16 %v253
      %v325 = vunpack.c.l.b16 %v254
      %v326 = vunpack.c.l.b16 %v255
      %v327 = vunpack.c.h.b16 %v255
      %v328 = vunpack.c.l.b16 %v256
      %v329 = vunpack.c.l.b16 %v257
      %v330 = vunpack.c.h.b16 %v257
      %v331 = vunpack.c.l.b16 %v258
      %v332 = vunpack.c.l.b16 %v259
      %v333 = vunpack.c.h.b16 %v259
      %v334 = vunpack.c.l.b16 %v260
      %v335 = vunpack.c.l.b16 %v261
      %v336 = vunpack.c.h.b16 %v261
      %v337 = vunpack.c.l.b16 %v262
      %v338 = vunpack.c.l.b16 %v263
      %v339 = vunpack.c.h.b16 %v263
      %v340 = vunpack.c.l.b16 %v264
      %v341 = vunpack.c.l.b16 %v265
      %v342 = vunpack.c.h.b16 %v265
      %v343 = vunpack.c.l.b16 %v266
      %v344 = vunpack.c.l.b16 %v267
      %v345 = vunpack.c.h.b16 %v267
      %v346 = vunpack.c.l.b16 %v268
      %v347 = vunpack.c.l.b16 %v269
      %v348 = vunpack.c.h.b16 %v269
      %v349 = vunpack.c.l.b16 %v270
      %v350 = vunpack.c.l.b16 %v271
      %v351 = vunpack.c.h.b16 %v271
      %v352 = vunpack.c.l.b16 %v272
      %v353 = vunpack.c.l.b16 %v273
      %v354 = vunpack.c.h.b16 %v273
      %v355 = vunpack.c.l.b16 %v274
      %v356 = vunpack.c.l.b16 %v275
      %v357 = vunpack.c.h.b16 %v275
      %v358 = vunpack.c.l.b16 %v276
      %v359 = vunpack.c.l.b16 %v277
      %v360 = vunpack.c.h.b16 %v277
      %v361 = vunpack.c.l.b16 %v278
      %v362 = vunpack.c.l.b16 %v279
      %v363 = vunpack.c.h.b16 %v279
      %v364 = vunpack.c.l.b16 %v280
      %v365 = vunpack.c.l.b16 %v281
      %v366 = vunpack.c.h.b16 %v281
      %v367 = vunpack.c.l.b16 %v282
      %v368 = vunpack.c.l.b16 %v283
      %v369 = vunpack.c.h.b16 %v283
      %v370 = vunpack.c.l.b16 %v284
      %v371 = vpack.c.b16 %v326, %v323
      %v372 = vpack.c.b16 %v327, %v324
      %v373 = vpack.c.b16 %v328, %v325
      %v374 = vpack.c.b16 %v332, %v329
      %v375 = vpack.c.b16 %v333, %v330
      %v376 = vpack.c.b16 %v334, %v331
      %v377 = vpack.c.b16 %v338, %v335
      %v378 = vpack.c.b16 %v339, %v336
      %v379 = vpack.c.b16 %v340, %v337
      %v380 = vpack.c.b16 %v344, %v341
      %v381 = vpack.c.b16 %v345, %v342
      %v382 = vpack.c.b16 %v346, %v343
      %v383 = vpack.c.b16 %v350, %v347
      %v384 = vpack.c.b16 %v351, %v348
      %v385 = vpack.c.b16 %v352, %v349
      %v386 = vpack.c.b16 %v356, %v353
      %v387 = vpack.c.b16 %v357, %v354
      %v388 = vpack.c.b16 %v358, %v355
      %v389 = vpack.c.b16 %v362, %v359
      %v390 = vpack.c.b16 %v363, %v360
      %v391 = vpack.c.b16 %v364, %v361
      %v392 = vpack.c.b16 %v368, %v365
      %v393 = vpack.c.b16 %v369, %v366
      %v394 = vpack.c.b16 %v370, %v367
      %419 = vmatprep.subr.bf16.mxu0 %v393
      %420 = vmatpush1.bf16.msra.mxu0 %v392
      %421 = vmatprep.subr.bf16.mxu0 %v390
      %422 = vmatpush1.bf16.msra.mxu0 %v389
      %423 = vmatprep.subr.bf16.mxu0 %v387
      %424 = vmatpush1.bf16.msra.mxu0 %v386
      %425 = vmatprep.subr.bf16.mxu0 %v384
      %426 = vmatpush1.bf16.msra.mxu0 %v383
      %427 = vmatprep.subr.bf16.mxu0 %v381
      %428 = vmatpush1.bf16.msra.mxu0 %v380
      %429 = vmatprep.subr.bf16.mxu0 %v378
      %430 = vmatpush1.bf16.msra.mxu0 %v377
      %431 = vmatprep.subr.bf16.mxu0 %v375
      %432 = vmatpush1.bf16.msra.mxu0 %v374
      %433 = vmatprep.subr.bf16.mxu0 %v372
      %434 = vmatpush1.bf16.msra.mxu0 %v371
      %435 = vmatprep.subr.bf16.mxu0 0
      %436 = vmatpush2.bf16.msra.mxu0 0
      %437 = vmatprep.subr.bf16.mxu0 0
      %438 = vmatpush2.bf16.msra.mxu0 0
      %439 = vmatprep.subr.bf16.mxu0 0
      %440 = vmatpush2.bf16.msra.mxu0 0
      %441 = vmatprep.subr.bf16.mxu0 0
      %442 = vmatpush2.bf16.msra.mxu0 0
      %443 = vmatprep.subr.bf16.mxu0 0
      %444 = vmatpush2.bf16.msra.mxu0 0
      %445 = vmatprep.subr.bf16.mxu0 0
      %446 = vmatpush2.bf16.msra.mxu0 0
      %447 = vmatprep.subr.bf16.mxu0 0
      %448 = vmatpush2.bf16.msra.mxu0 0
      %449 = vmatprep.subr.bf16.mxu0 0
      %450 = vmatpush2.bf16.msra.mxu0 0
      %451 = vmatprep.mubr.bf16.mxu0 0
      %452 = vmatmul.mubr.bf16.gmra.mxu0 %v290
      %v453 = vpop.f32.mrf.mxu0
      %v454 = vadd.f32 0.0, %v453
      %v455 = vpop.f32.mrf.mxu0
      %v456 = vadd.f32 0.0, %v455
      %v457 = vpop.f32.mrf.mxu0
      %v458 = vpop.f32.mrf.mxu0
      %459 = vdwg.mxu0
      %460 = vmatprep.subr.bf16.mxu0 0
      %461 = vmatpush1.bf16.msra.mxu0 %v394
      %462 = vmatprep.subr.bf16.mxu0 0
      %463 = vmatpush1.bf16.msra.mxu0 %v391
      %464 = vmatprep.subr.bf16.mxu0 0
      %465 = vmatpush1.bf16.msra.mxu0 %v388
      %466 = vmatprep.subr.bf16.mxu0 0
      %467 = vmatpush1.bf16.msra.mxu0 %v385
      %468 = vmatprep.subr.bf16.mxu0 0
      %469 = vmatpush1.bf16.msra.mxu0 %v382
      %470 = vmatprep.subr.bf16.mxu0 0
      %471 = vmatpush1.bf16.msra.mxu0 %v379
      %472 = vmatprep.subr.bf16.mxu0 0
      %473 = vmatpush1.bf16.msra.mxu0 %v376
      %474 = vmatprep.subr.bf16.mxu0 0
      %475 = vmatpush1.bf16.msra.mxu0 %v373
      %476 = vmatprep.subr.bf16.mxu0 0
      %477 = vmatpush2.bf16.msra.mxu0 0
      %478 = vmatprep.subr.bf16.mxu0 0
      %479 = vmatpush2.bf16.msra.mxu0 0
      %480 = vmatprep.subr.bf16.mxu0 0
      %481 = vmatpush2.bf16.msra.mxu0 0
      %482 = vmatprep.subr.bf16.mxu0 0
      %483 = vmatpush2.bf16.msra.mxu0 0
      %484 = vmatprep.subr.bf16.mxu0 0
      %485 = vmatpush2.bf16.msra.mxu0 0
      %486 = vmatprep.subr.bf16.mxu0 0
      %487 = vmatpush2.bf16.msra.mxu0 0
      %488 = vmatprep.subr.bf16.mxu0 0
      %489 = vmatpush2.bf16.msra.mxu0 0
      %490 = vmatprep.subr.bf16.mxu0 0
      %491 = vmatpush2.bf16.msra.mxu0 0
      %492 = vmatprep.mubr.bf16.mxu0 0
      %493 = vmatmul.mubr.bf16.gmra.mxu0 %v290
      %v494 = vpop.f32.mrf.mxu0
      %v495 = vadd.f32 0.0, %v494
      %v496 = vpop.f32.mrf.mxu0
      %v497 = vpop.f32.mrf.mxu0
      %v498 = vpop.f32.mrf.mxu0
      %499 = vdwg.mxu0
      %v500 = vadd.f32 %v287, %v454
      %v501 = vxor.u32 %v500, 2147483648
      %v502 = vmul.f32 %v501, 1.442695
      %v503 = vpow.pop %v502
      %v504 = vadd.f32 %v503, 1.0
      %v505 = vrcp.pop %v504
      %v506 = vmul.f32 1.0, %v505
      %v507 = vadd.f32 %v288, %v456
      %v508 = vxor.u32 %v507, 2147483648
      %v509 = vmul.f32 %v508, 1.442695
      %v510 = vpow.pop %v509
      %v511 = vadd.f32 %v510, 1.0
      %v512 = vrcp.pop %v511
      %v513 = vmul.f32 1.0, %v512
      %v515 = vlaneseq
      %v516 = vshrl.u32 %v515, 7
      %v517 = vsub.s32 0, %v516
      %v518 = vrot.slane %v285, %v517
      %v520 = vadd.f32 %v495, %v518
      %v521 = vmul.f32 %v506, %v520
      %v522 = vadd.f32 %v289, %v521
      %v523 = vtanh.pop %v522
      %v524 = vsub.f32 1.0, %v513
      %v525 = vmul.f32 %v524, %v523
      %v526 = vmul.f32 %v513, %v286
      %v527 = vadd.f32 %v525, %v526
      %528 = vst [vmem:[%s245] sm:$0xff] %v527
      %s529 = scalar_lea.vmem %s227, 24
      %v530 = vld [vmem:[%s529] sm:$0xff]
      %v531 = vld [vmem:[%s529 + $0x8] sm:$0xff]
      %v532 = vld [vmem:[%s529 + $0x10] sm:$0xff]
      %v533 = vpack.c.bf16 %v527, %v527
      %534 = vmatprep.subr.bf16.mxu0 %v393
      %535 = vmatpush1.bf16.msra.mxu0 %v392
      %536 = vmatprep.subr.bf16.mxu0 %v390
      %537 = vmatpush1.bf16.msra.mxu0 %v389
      %538 = vmatprep.subr.bf16.mxu0 %v387
      %539 = vmatpush1.bf16.msra.mxu0 %v386
      %540 = vmatprep.subr.bf16.mxu0 %v384
      %541 = vmatpush1.bf16.msra.mxu0 %v383
      %542 = vmatprep.subr.bf16.mxu0 %v381
      %543 = vmatpush1.bf16.msra.mxu0 %v380
      %544 = vmatprep.subr.bf16.mxu0 %v378
      %545 = vmatpush1.bf16.msra.mxu0 %v377
      %546 = vmatprep.subr.bf16.mxu0 %v375
      %547 = vmatpush1.bf16.msra.mxu0 %v374
      %548 = vmatprep.subr.bf16.mxu0 %v372
      %549 = vmatpush1.bf16.msra.mxu0 %v371
      %550 = vmatprep.subr.bf16.mxu0 0
      %551 = vmatpush2.bf16.msra.mxu0 0
      %552 = vmatprep.subr.bf16.mxu0 0
      %553 = vmatpush2.bf16.msra.mxu0 0
      %554 = vmatprep.subr.bf16.mxu0 0
      %555 = vmatpush2.bf16.msra.mxu0 0
      %556 = vmatprep.subr.bf16.mxu0 0
      %557 = vmatpush2.bf16.msra.mxu0 0
      %558 = vmatprep.subr.bf16.mxu0 0
      %559 = vmatpush2.bf16.msra.mxu0 0
      %560 = vmatprep.subr.bf16.mxu0 0
      %561 = vmatpush2.bf16.msra.mxu0 0
      %562 = vmatprep.subr.bf16.mxu0 0
      %563 = vmatpush2.bf16.msra.mxu0 0
      %564 = vmatprep.subr.bf16.mxu0 0
      %565 = vmatpush2.bf16.msra.mxu0 0
      %566 = vmatprep.mubr.bf16.mxu0 0
      %567 = vmatmul.mubr.bf16.gmra.mxu0 %v533
      %v568 = vpop.f32.mrf.mxu0
      %v569 = vadd.f32 0.0, %v568
      %v570 = vpop.f32.mrf.mxu0
      %v571 = vadd.f32 0.0, %v570
      %v572 = vpop.f32.mrf.mxu0
      %v573 = vpop.f32.mrf.mxu0
      %574 = vdwg.mxu0
      %575 = vmatprep.subr.bf16.mxu0 0
      %576 = vmatpush1.bf16.msra.mxu0 %v394
      %577 = vmatprep.subr.bf16.mxu0 0
      %578 = vmatpush1.bf16.msra.mxu0 %v391
      %579 = vmatprep.subr.bf16.mxu0 0
      %580 = vmatpush1.bf16.msra.mxu0 %v388
      %581 = vmatprep.subr.bf16.mxu0 0
      %582 = vmatpush1.bf16.msra.mxu0 %v385
      %583 = vmatprep.subr.bf16.mxu0 0
      %584 = vmatpush1.bf16.msra.mxu0 %v382
      %585 = vmatprep.subr.bf16.mxu0 0
      %586 = vmatpush1.bf16.msra.mxu0 %v379
      %587 = vmatprep.subr.bf16.mxu0 0
      %588 = vmatpush1.bf16.msra.mxu0 %v376
      %589 = vmatprep.subr.bf16.mxu0 0
      %590 = vmatpush1.bf16.msra.mxu0 %v373
      %591 = vmatprep.subr.bf16.mxu0 0
      %592 = vmatpush2.bf16.msra.mxu0 0
      %593 = vmatprep.subr.bf16.mxu0 0
      %594 = vmatpush2.bf16.msra.mxu0 0
      %595 = vmatprep.subr.bf16.mxu0 0
      %596 = vmatpush2.bf16.msra.mxu0 0
      %597 = vmatprep.subr.bf16.mxu0 0
      %598 = vmatpush2.bf16.msra.mxu0 0
      %599 = vmatprep.subr.bf16.mxu0 0
      %600 = vmatpush2.bf16.msra.mxu0 0
      %601 = vmatprep.subr.bf16.mxu0 0
      %602 = vmatpush2.bf16.msra.mxu0 0
      %603 = vmatprep.subr.bf16.mxu0 0
      %604 = vmatpush2.bf16.msra.mxu0 0
      %605 = vmatprep.subr.bf16.mxu0 0
      %606 = vmatpush2.bf16.msra.mxu0 0
      %607 = vmatprep.mubr.bf16.mxu0 0
      %608 = vmatmul.mubr.bf16.gmra.mxu0 %v533
      %v609 = vpop.f32.mrf.mxu0
      %v610 = vadd.f32 0.0, %v609
      %v611 = vpop.f32.mrf.mxu0
      %v612 = vpop.f32.mrf.mxu0
      %v613 = vpop.f32.mrf.mxu0
      %614 = vdwg.mxu0
      %v615 = vadd.f32 %v530, %v569
      %v616 = vxor.u32 %v615, 2147483648
      %v617 = vmul.f32 %v616, 1.442695
      %v618 = vpow.pop %v617
      %v619 = vadd.f32 %v618, 1.0
      %v620 = vrcp.pop %v619
      %v621 = vmul.f32 1.0, %v620
      %v622 = vadd.f32 %v531, %v571
      %v623 = vxor.u32 %v622, 2147483648
      %v624 = vmul.f32 %v623, 1.442695
      %v625 = vpow.pop %v624
      %v626 = vadd.f32 %v625, 1.0
      %v627 = vrcp.pop %v626
      %v628 = vmul.f32 1.0, %v627
      %v629 = vadd.f32 %v610, %v518
      %v630 = vmul.f32 %v621, %v629
      %v631 = vadd.f32 %v532, %v630
      %v632 = vtanh.pop %v631
      %v633 = vsub.f32 1.0, %v628
      %v634 = vmul.f32 %v633, %v632
      %v635 = vmul.f32 %v628, %v527
      %v636 = vadd.f32 %v634, %v635
      %s637 = scalar_lea.vmem %s245, 8
      %638 = vst [vmem:[%s637] sm:$0xff] %v636
      %s639 = scalar_lea.vmem %s227, 48
      %v640 = vld [vmem:[%s639] sm:$0xff]
      %v641 = vld [vmem:[%s639 + $0x8] sm:$0xff]
      %v642 = vld [vmem:[%s639 + $0x10] sm:$0xff]
      %v643 = vpack.c.bf16 %v636, %v636
      %644 = vmatprep.subr.bf16.mxu0 %v393
      %645 = vmatpush1.bf16.msra.mxu0 %v392
      %646 = vmatprep.subr.bf16.mxu0 %v390
      %647 = vmatpush1.bf16.msra.mxu0 %v389
      %648 = vmatprep.subr.bf16.mxu0 %v387
      %649 = vmatpush1.bf16.msra.mxu0 %v386
      %650 = vmatprep.subr.bf16.mxu0 %v384
      %651 = vmatpush1.bf16.msra.mxu0 %v383
      %652 = vmatprep.subr.bf16.mxu0 %v381
      %653 = vmatpush1.bf16.msra.mxu0 %v380
      %654 = vmatprep.subr.bf16.mxu0 %v378
      %655 = vmatpush1.bf16.msra.mxu0 %v377
      %656 = vmatprep.subr.bf16.mxu0 %v375
      %657 = vmatpush1.bf16.msra.mxu0 %v374
      %658 = vmatprep.subr.bf16.mxu0 %v372
      %659 = vmatpush1.bf16.msra.mxu0 %v371
      %660 = vmatprep.subr.bf16.mxu0 0
      %661 = vmatpush2.bf16.msra.mxu0 0
      %662 = vmatprep.subr.bf16.mxu0 0
      %663 = vmatpush2.bf16.msra.mxu0 0
      %664 = vmatprep.subr.bf16.mxu0 0
      %665 = vmatpush2.bf16.msra.mxu0 0
      %666 = vmatprep.subr.bf16.mxu0 0
      %667 = vmatpush2.bf16.msra.mxu0 0
      %668 = vmatprep.subr.bf16.mxu0 0
      %669 = vmatpush2.bf16.msra.mxu0 0
      %670 = vmatprep.subr.bf16.mxu0 0
      %671 = vmatpush2.bf16.msra.mxu0 0
      %672 = vmatprep.subr.bf16.mxu0 0
      %673 = vmatpush2.bf16.msra.mxu0 0
      %674 = vmatprep.subr.bf16.mxu0 0
      %675 = vmatpush2.bf16.msra.mxu0 0
      %676 = vmatprep.mubr.bf16.mxu0 0
      %677 = vmatmul.mubr.bf16.gmra.mxu0 %v643
      %v678 = vpop.f32.mrf.mxu0
      %v679 = vadd.f32 0.0, %v678
      %v680 = vpop.f32.mrf.mxu0
      %v681 = vadd.f32 0.0, %v680
      %v682 = vpop.f32.mrf.mxu0
      %v683 = vpop.f32.mrf.mxu0
      %684 = vdwg.mxu0
      %685 = vmatprep.subr.bf16.mxu0 0
      %686 = vmatpush1.bf16.msra.mxu0 %v394
      %687 = vmatprep.subr.bf16.mxu0 0
      %688 = vmatpush1.bf16.msra.mxu0 %v391
      %689 = vmatprep.subr.bf16.mxu0 0
      %690 = vmatpush1.bf16.msra.mxu0 %v388
      %691 = vmatprep.subr.bf16.mxu0 0
      %692 = vmatpush1.bf16.msra.mxu0 %v385
      %693 = vmatprep.subr.bf16.mxu0 0
      %694 = vmatpush1.bf16.msra.mxu0 %v382
      %695 = vmatprep.subr.bf16.mxu0 0
      %696 = vmatpush1.bf16.msra.mxu0 %v379
      %697 = vmatprep.subr.bf16.mxu0 0
      %698 = vmatpush1.bf16.msra.mxu0 %v376
      %699 = vmatprep.subr.bf16.mxu0 0
      %700 = vmatpush1.bf16.msra.mxu0 %v373
      %701 = vmatprep.subr.bf16.mxu0 0
      %702 = vmatpush2.bf16.msra.mxu0 0
      %703 = vmatprep.subr.bf16.mxu0 0
      %704 = vmatpush2.bf16.msra.mxu0 0
      %705 = vmatprep.subr.bf16.mxu0 0
      %706 = vmatpush2.bf16.msra.mxu0 0
      %707 = vmatprep.subr.bf16.mxu0 0
      %708 = vmatpush2.bf16.msra.mxu0 0
      %709 = vmatprep.subr.bf16.mxu0 0
      %710 = vmatpush2.bf16.msra.mxu0 0
      %711 = vmatprep.subr.bf16.mxu0 0
      %712 = vmatpush2.bf16.msra.mxu0 0
      %713 = vmatprep.subr.bf16.mxu0 0
      %714 = vmatpush2.bf16.msra.mxu0 0
      %715 = vmatprep.subr.bf16.mxu0 0
      %716 = vmatpush2.bf16.msra.mxu0 0
      %717 = vmatprep.mubr.bf16.mxu0 0
      %718 = vmatmul.mubr.bf16.gmra.mxu0 %v643
      %v719 = vpop.f32.mrf.mxu0
      %v720 = vadd.f32 0.0, %v719
      %v721 = vpop.f32.mrf.mxu0
      %v722 = vpop.f32.mrf.mxu0
      %v723 = vpop.f32.mrf.mxu0
      %724 = vdwg.mxu0
      %v725 = vadd.f32 %v640, %v679
      %v726 = vxor.u32 %v725, 2147483648
      %v727 = vmul.f32 %v726, 1.442695
      %v728 = vpow.pop %v727
      %v729 = vadd.f32 %v728, 1.0
      %v730 = vrcp.pop %v729
      %v731 = vmul.f32 1.0, %v730
      %v732 = vadd.f32 %v641, %v681
      %v733 = vxor.u32 %v732, 2147483648
      %v734 = vmul.f32 %v733, 1.442695
      %v735 = vpow.pop %v734
      %v736 = vadd.f32 %v735, 1.0
      %v737 = vrcp.pop %v736
      %v738 = vmul.f32 1.0, %v737
      %v739 = vadd.f32 %v720, %v518
      %v740 = vmul.f32 %v731, %v739
      %v741 = vadd.f32 %v642, %v740
      %v742 = vtanh.pop %v741
      %v743 = vsub.f32 1.0, %v738
      %v744 = vmul.f32 %v743, %v742
      %v745 = vmul.f32 %v738, %v636
      %v746 = vadd.f32 %v744, %v745
      %s747 = scalar_lea.vmem %s245, 16
      %748 = vst [vmem:[%s747] sm:$0xff] %v746
      %s749 = scalar_lea.vmem %s227, 72
      %v750 = vld [vmem:[%s749] sm:$0xff]
      %v751 = vld [vmem:[%s749 + $0x8] sm:$0xff]
      %v752 = vld [vmem:[%s749 + $0x10] sm:$0xff]
      %v753 = vpack.c.bf16 %v746, %v746
      %754 = vmatprep.subr.bf16.mxu0 %v393
      %755 = vmatpush1.bf16.msra.mxu0 %v392
      %756 = vmatprep.subr.bf16.mxu0 %v390
      %757 = vmatpush1.bf16.msra.mxu0 %v389
      %758 = vmatprep.subr.bf16.mxu0 %v387
      %759 = vmatpush1.bf16.msra.mxu0 %v386
      %760 = vmatprep.subr.bf16.mxu0 %v384
      %761 = vmatpush1.bf16.msra.mxu0 %v383
      %762 = vmatprep.subr.bf16.mxu0 %v381
      %763 = vmatpush1.bf16.msra.mxu0 %v380
      %764 = vmatprep.subr.bf16.mxu0 %v378
      %765 = vmatpush1.bf16.msra.mxu0 %v377
      %766 = vmatprep.subr.bf16.mxu0 %v375
      %767 = vmatpush1.bf16.msra.mxu0 %v374
      %768 = vmatprep.subr.bf16.mxu0 %v372
      %769 = vmatpush1.bf16.msra.mxu0 %v371
      %770 = vmatprep.subr.bf16.mxu0 0
      %771 = vmatpush2.bf16.msra.mxu0 0
      %772 = vmatprep.subr.bf16.mxu0 0
      %773 = vmatpush2.bf16.msra.mxu0 0
      %774 = vmatprep.subr.bf16.mxu0 0
      %775 = vmatpush2.bf16.msra.mxu0 0
      %776 = vmatprep.subr.bf16.mxu0 0
      %777 = vmatpush2.bf16.msra.mxu0 0
      %778 = vmatprep.subr.bf16.mxu0 0
      %779 = vmatpush2.bf16.msra.mxu0 0
      %780 = vmatprep.subr.bf16.mxu0 0
      %781 = vmatpush2.bf16.msra.mxu0 0
      %782 = vmatprep.subr.bf16.mxu0 0
      %783 = vmatpush2.bf16.msra.mxu0 0
      %784 = vmatprep.subr.bf16.mxu0 0
      %785 = vmatpush2.bf16.msra.mxu0 0
      %786 = vmatprep.mubr.bf16.mxu0 0
      %787 = vmatmul.mubr.bf16.gmra.mxu0 %v753
      %v788 = vpop.f32.mrf.mxu0
      %v789 = vadd.f32 0.0, %v788
      %v790 = vpop.f32.mrf.mxu0
      %v791 = vadd.f32 0.0, %v790
      %v792 = vpop.f32.mrf.mxu0
      %v793 = vpop.f32.mrf.mxu0
      %794 = vdwg.mxu0
      %795 = vmatprep.subr.bf16.mxu0 0
      %796 = vmatpush1.bf16.msra.mxu0 %v394
      %797 = vmatprep.subr.bf16.mxu0 0
      %798 = vmatpush1.bf16.msra.mxu0 %v391
      %799 = vmatprep.subr.bf16.mxu0 0
      %800 = vmatpush1.bf16.msra.mxu0 %v388
      %801 = vmatprep.subr.bf16.mxu0 0
      %802 = vmatpush1.bf16.msra.mxu0 %v385
      %803 = vmatprep.subr.bf16.mxu0 0
      %804 = vmatpush1.bf16.msra.mxu0 %v382
      %805 = vmatprep.subr.bf16.mxu0 0
      %806 = vmatpush1.bf16.msra.mxu0 %v379
      %807 = vmatprep.subr.bf16.mxu0 0
      %808 = vmatpush1.bf16.msra.mxu0 %v376
      %809 = vmatprep.subr.bf16.mxu0 0
      %810 = vmatpush1.bf16.msra.mxu0 %v373
      %811 = vmatprep.subr.bf16.mxu0 0
      %812 = vmatpush2.bf16.msra.mxu0 0
      %813 = vmatprep.subr.bf16.mxu0 0
      %814 = vmatpush2.bf16.msra.mxu0 0
      %815 = vmatprep.subr.bf16.mxu0 0
      %816 = vmatpush2.bf16.msra.mxu0 0
      %817 = vmatprep.subr.bf16.mxu0 0
      %818 = vmatpush2.bf16.msra.mxu0 0
      %819 = vmatprep.subr.bf16.mxu0 0
      %820 = vmatpush2.bf16.msra.mxu0 0
      %821 = vmatprep.subr.bf16.mxu0 0
      %822 = vmatpush2.bf16.msra.mxu0 0
      %823 = vmatprep.subr.bf16.mxu0 0
      %824 = vmatpush2.bf16.msra.mxu0 0
      %825 = vmatprep.subr.bf16.mxu0 0
      %826 = vmatpush2.bf16.msra.mxu0 0
      %827 = vmatprep.mubr.bf16.mxu0 0
      %828 = vmatmul.mubr.bf16.gmra.mxu0 %v753
      %v829 = vpop.f32.mrf.mxu0
      %v830 = vadd.f32 0.0, %v829
      %v831 = vpop.f32.mrf.mxu0
      %v832 = vpop.f32.mrf.mxu0
      %v833 = vpop.f32.mrf.mxu0
      %834 = vdwg.mxu0
      %v835 = vadd.f32 %v750, %v789
      %v836 = vxor.u32 %v835, 2147483648
      %v837 = vmul.f32 %v836, 1.442695
      %v838 = vpow.pop %v837
      %v839 = vadd.f32 %v838, 1.0
      %v840 = vrcp.pop %v839
      %v841 = vmul.f32 1.0, %v840
      %v842 = vadd.f32 %v751, %v791
      %v843 = vxor.u32 %v842, 2147483648
      %v844 = vmul.f32 %v843, 1.442695
      %v845 = vpow.pop %v844
      %v846 = vadd.f32 %v845, 1.0
      %v847 = vrcp.pop %v846
      %v848 = vmul.f32 1.0, %v847
      %v849 = vadd.f32 %v830, %v518
      %v850 = vmul.f32 %v841, %v849
      %v851 = vadd.f32 %v752, %v850
      %v852 = vtanh.pop %v851
      %v853 = vsub.f32 1.0, %v848
      %v854 = vmul.f32 %v853, %v852
      %v855 = vmul.f32 %v848, %v746
      %v856 = vadd.f32 %v854, %v855
      %s857 = scalar_lea.vmem %s245, 24
      %858 = vst [vmem:[%s857] sm:$0xff] %v856
      %s859 = scalar_lea.vmem %s227, 96
      %v860 = vld [vmem:[%s859] sm:$0xff]
      %v861 = vld [vmem:[%s859 + $0x8] sm:$0xff]
      %v862 = vld [vmem:[%s859 + $0x10] sm:$0xff]
      %v863 = vpack.c.bf16 %v856, %v856
      %864 = vmatprep.subr.bf16.mxu0 %v393
      %865 = vmatpush1.bf16.msra.mxu0 %v392
      %866 = vmatprep.subr.bf16.mxu0 %v390
      %867 = vmatpush1.bf16.msra.mxu0 %v389
      %868 = vmatprep.subr.bf16.mxu0 %v387
      %869 = vmatpush1.bf16.msra.mxu0 %v386
      %870 = vmatprep.subr.bf16.mxu0 %v384
      %871 = vmatpush1.bf16.msra.mxu0 %v383
      %872 = vmatprep.subr.bf16.mxu0 %v381
      %873 = vmatpush1.bf16.msra.mxu0 %v380
      %874 = vmatprep.subr.bf16.mxu0 %v378
      %875 = vmatpush1.bf16.msra.mxu0 %v377
      %876 = vmatprep.subr.bf16.mxu0 %v375
      %877 = vmatpush1.bf16.msra.mxu0 %v374
      %878 = vmatprep.subr.bf16.mxu0 %v372
      %879 = vmatpush1.bf16.msra.mxu0 %v371
      %880 = vmatprep.subr.bf16.mxu0 0
      %881 = vmatpush2.bf16.msra.mxu0 0
      %882 = vmatprep.subr.bf16.mxu0 0
      %883 = vmatpush2.bf16.msra.mxu0 0
      %884 = vmatprep.subr.bf16.mxu0 0
      %885 = vmatpush2.bf16.msra.mxu0 0
      %886 = vmatprep.subr.bf16.mxu0 0
      %887 = vmatpush2.bf16.msra.mxu0 0
      %888 = vmatprep.subr.bf16.mxu0 0
      %889 = vmatpush2.bf16.msra.mxu0 0
      %890 = vmatprep.subr.bf16.mxu0 0
      %891 = vmatpush2.bf16.msra.mxu0 0
      %892 = vmatprep.subr.bf16.mxu0 0
      %893 = vmatpush2.bf16.msra.mxu0 0
      %894 = vmatprep.subr.bf16.mxu0 0
      %895 = vmatpush2.bf16.msra.mxu0 0
      %896 = vmatprep.mubr.bf16.mxu0 0
      %897 = vmatmul.mubr.bf16.gmra.mxu0 %v863
      %v898 = vpop.f32.mrf.mxu0
      %v899 = vadd.f32 0.0, %v898
      %v900 = vpop.f32.mrf.mxu0
      %v901 = vadd.f32 0.0, %v900
      %v902 = vpop.f32.mrf.mxu0
      %v903 = vpop.f32.mrf.mxu0
      %904 = vdwg.mxu0
      %905 = vmatprep.subr.bf16.mxu0 0
      %906 = vmatpush1.bf16.msra.mxu0 %v394
      %907 = vmatprep.subr.bf16.mxu0 0
      %908 = vmatpush1.bf16.msra.mxu0 %v391
      %909 = vmatprep.subr.bf16.mxu0 0
      %910 = vmatpush1.bf16.msra.mxu0 %v388
      %911 = vmatprep.subr.bf16.mxu0 0
      %912 = vmatpush1.bf16.msra.mxu0 %v385
      %913 = vmatprep.subr.bf16.mxu0 0
      %914 = vmatpush1.bf16.msra.mxu0 %v382
      %915 = vmatprep.subr.bf16.mxu0 0
      %916 = vmatpush1.bf16.msra.mxu0 %v379
      %917 = vmatprep.subr.bf16.mxu0 0
      %918 = vmatpush1.bf16.msra.mxu0 %v376
      %919 = vmatprep.subr.bf16.mxu0 0
      %920 = vmatpush1.bf16.msra.mxu0 %v373
      %921 = vmatprep.subr.bf16.mxu0 0
      %922 = vmatpush2.bf16.msra.mxu0 0
      %923 = vmatprep.subr.bf16.mxu0 0
      %924 = vmatpush2.bf16.msra.mxu0 0
      %925 = vmatprep.subr.bf16.mxu0 0
      %926 = vmatpush2.bf16.msra.mxu0 0
      %927 = vmatprep.subr.bf16.mxu0 0
      %928 = vmatpush2.bf16.msra.mxu0 0
      %929 = vmatprep.subr.bf16.mxu0 0
      %930 = vmatpush2.bf16.msra.mxu0 0
      %931 = vmatprep.subr.bf16.mxu0 0
      %932 = vmatpush2.bf16.msra.mxu0 0
      %933 = vmatprep.subr.bf16.mxu0 0
      %934 = vmatpush2.bf16.msra.mxu0 0
      %935 = vmatprep.subr.bf16.mxu0 0
      %936 = vmatpush2.bf16.msra.mxu0 0
      %937 = vmatprep.mubr.bf16.mxu0 0
      %938 = vmatmul.mubr.bf16.gmra.mxu0 %v863
      %v939 = vpop.f32.mrf.mxu0
      %v940 = vadd.f32 0.0, %v939
      %v941 = vpop.f32.mrf.mxu0
      %v942 = vpop.f32.mrf.mxu0
      %v943 = vpop.f32.mrf.mxu0
      %944 = vdwg.mxu0
      %v945 = vadd.f32 %v860, %v899
      %v946 = vxor.u32 %v945, 2147483648
      %v947 = vmul.f32 %v946, 1.442695
      %v948 = vpow.pop %v947
      %v949 = vadd.f32 %v948, 1.0
      %v950 = vrcp.pop %v949
      %v951 = vmul.f32 1.0, %v950
      %v952 = vadd.f32 %v861, %v901
      %v953 = vxor.u32 %v952, 2147483648
      %v954 = vmul.f32 %v953, 1.442695
      %v955 = vpow.pop %v954
      %v956 = vadd.f32 %v955, 1.0
      %v957 = vrcp.pop %v956
      %v958 = vmul.f32 1.0, %v957
      %v959 = vadd.f32 %v940, %v518
      %v960 = vmul.f32 %v951, %v959
      %v961 = vadd.f32 %v862, %v960
      %v962 = vtanh.pop %v961
      %v963 = vsub.f32 1.0, %v958
      %v964 = vmul.f32 %v963, %v962
      %v965 = vmul.f32 %v958, %v856
      %v966 = vadd.f32 %v964, %v965
      %s967 = scalar_lea.vmem %s245, 32
      %968 = vst [vmem:[%s967] sm:$0xff] %v966
      %s969 = scalar_lea.vmem %s227, 120
      %v970 = vld [vmem:[%s969] sm:$0xff]
      %v971 = vld [vmem:[%s969 + $0x8] sm:$0xff]
      %v972 = vld [vmem:[%s969 + $0x10] sm:$0xff]
      %v973 = vpack.c.bf16 %v966, %v966
      %974 = vmatprep.subr.bf16.mxu0 %v393
      %975 = vmatpush1.bf16.msra.mxu0 %v392
      %976 = vmatprep.subr.bf16.mxu0 %v390
      %977 = vmatpush1.bf16.msra.mxu0 %v389
      %978 = vmatprep.subr.bf16.mxu0 %v387
      %979 = vmatpush1.bf16.msra.mxu0 %v386
      %980 = vmatprep.subr.bf16.mxu0 %v384
      %981 = vmatpush1.bf16.msra.mxu0 %v383
      %982 = vmatprep.subr.bf16.mxu0 %v381
      %983 = vmatpush1.bf16.msra.mxu0 %v380
      %984 = vmatprep.subr.bf16.mxu0 %v378
      %985 = vmatpush1.bf16.msra.mxu0 %v377
      %986 = vmatprep.subr.bf16.mxu0 %v375
      %987 = vmatpush1.bf16.msra.mxu0 %v374
      %988 = vmatprep.subr.bf16.mxu0 %v372
      %989 = vmatpush1.bf16.msra.mxu0 %v371
      %990 = vmatprep.subr.bf16.mxu0 0
      %991 = vmatpush2.bf16.msra.mxu0 0
      %992 = vmatprep.subr.bf16.mxu0 0
      %993 = vmatpush2.bf16.msra.mxu0 0
      %994 = vmatprep.subr.bf16.mxu0 0
      %995 = vmatpush2.bf16.msra.mxu0 0
      %996 = vmatprep.subr.bf16.mxu0 0
      %997 = vmatpush2.bf16.msra.mxu0 0
      %998 = vmatprep.subr.bf16.mxu0 0
      %999 = vmatpush2.bf16.msra.mxu0 0
      %1000 = vmatprep.subr.bf16.mxu0 0
      %1001 = vmatpush2.bf16.msra.mxu0 0
      %1002 = vmatprep.subr.bf16.mxu0 0
      %1003 = vmatpush2.bf16.msra.mxu0 0
      %1004 = vmatprep.subr.bf16.mxu0 0
      %1005 = vmatpush2.bf16.msra.mxu0 0
      %1006 = vmatprep.mubr.bf16.mxu0 0
      %1007 = vmatmul.mubr.bf16.gmra.mxu0 %v973
      %v1008 = vpop.f32.mrf.mxu0
      %v1009 = vadd.f32 0.0, %v1008
      %v1010 = vpop.f32.mrf.mxu0
      %v1011 = vadd.f32 0.0, %v1010
      %v1012 = vpop.f32.mrf.mxu0
      %v1013 = vpop.f32.mrf.mxu0
      %1014 = vdwg.mxu0
      %1015 = vmatprep.subr.bf16.mxu0 0
      %1016 = vmatpush1.bf16.msra.mxu0 %v394
      %1017 = vmatprep.subr.bf16.mxu0 0
      %1018 = vmatpush1.bf16.msra.mxu0 %v391
      %1019 = vmatprep.subr.bf16.mxu0 0
      %1020 = vmatpush1.bf16.msra.mxu0 %v388
      %1021 = vmatprep.subr.bf16.mxu0 0
      %1022 = vmatpush1.bf16.msra.mxu0 %v385
      %1023 = vmatprep.subr.bf16.mxu0 0
      %1024 = vmatpush1.bf16.msra.mxu0 %v382
      %1025 = vmatprep.subr.bf16.mxu0 0
      %1026 = vmatpush1.bf16.msra.mxu0 %v379
      %1027 = vmatprep.subr.bf16.mxu0 0
      %1028 = vmatpush1.bf16.msra.mxu0 %v376
      %1029 = vmatprep.subr.bf16.mxu0 0
      %1030 = vmatpush1.bf16.msra.mxu0 %v373
      %1031 = vmatprep.subr.bf16.mxu0 0
      %1032 = vmatpush2.bf16.msra.mxu0 0
      %1033 = vmatprep.subr.bf16.mxu0 0
      %1034 = vmatpush2.bf16.msra.mxu0 0
      %1035 = vmatprep.subr.bf16.mxu0 0
      %1036 = vmatpush2.bf16.msra.mxu0 0
      %1037 = vmatprep.subr.bf16.mxu0 0
      %1038 = vmatpush2.bf16.msra.mxu0 0
      %1039 = vmatprep.subr.bf16.mxu0 0
      %1040 = vmatpush2.bf16.msra.mxu0 0
      %1041 = vmatprep.subr.bf16.mxu0 0
      %1042 = vmatpush2.bf16.msra.mxu0 0
      %1043 = vmatprep.subr.bf16.mxu0 0
      %1044 = vmatpush2.bf16.msra.mxu0 0
      %1045 = vmatprep.subr.bf16.mxu0 0
      %1046 = vmatpush2.bf16.msra.mxu0 0
      %1047 = vmatprep.mubr.bf16.mxu0 0
      %1048 = vmatmul.mubr.bf16.gmra.mxu0 %v973
      %v1049 = vpop.f32.mrf.mxu0
      %v1050 = vadd.f32 0.0, %v1049
      %v1051 = vpop.f32.mrf.mxu0
      %v1052 = vpop.f32.mrf.mxu0
      %v1053 = vpop.f32.mrf.mxu0
      %1054 = vdwg.mxu0
      %v1055 = vadd.f32 %v970, %v1009
      %v1056 = vxor.u32 %v1055, 2147483648
      %v1057 = vmul.f32 %v1056, 1.442695
      %v1058 = vpow.pop %v1057
      %v1059 = vadd.f32 %v1058, 1.0
      %v1060 = vrcp.pop %v1059
      %v1061 = vmul.f32 1.0, %v1060
      %v1062 = vadd.f32 %v971, %v1011
      %v1063 = vxor.u32 %v1062, 2147483648
      %v1064 = vmul.f32 %v1063, 1.442695
      %v1065 = vpow.pop %v1064
      %v1066 = vadd.f32 %v1065, 1.0
      %v1067 = vrcp.pop %v1066
      %v1068 = vmul.f32 1.0, %v1067
      %v1069 = vadd.f32 %v1050, %v518
      %v1070 = vmul.f32 %v1061, %v1069
      %v1071 = vadd.f32 %v972, %v1070
      %v1072 = vtanh.pop %v1071
      %v1073 = vsub.f32 1.0, %v1068
      %v1074 = vmul.f32 %v1073, %v1072
      %v1075 = vmul.f32 %v1068, %v966
      %v1076 = vadd.f32 %v1074, %v1075
      %s1077 = scalar_lea.vmem %s245, 40
      %1078 = vst [vmem:[%s1077] sm:$0xff] %v1076
      %s1079 = scalar_lea.vmem %s227, 144
      %v1080 = vld [vmem:[%s1079] sm:$0xff]
      %v1081 = vld [vmem:[%s1079 + $0x8] sm:$0xff]
      %v1082 = vld [vmem:[%s1079 + $0x10] sm:$0xff]
      %v1083 = vpack.c.bf16 %v1076, %v1076
      %1084 = vmatprep.subr.bf16.mxu0 %v393
      %1085 = vmatpush1.bf16.msra.mxu0 %v392
      %1086 = vmatprep.subr.bf16.mxu0 %v390
      %1087 = vmatpush1.bf16.msra.mxu0 %v389
      %1088 = vmatprep.subr.bf16.mxu0 %v387
      %1089 = vmatpush1.bf16.msra.mxu0 %v386
      %1090 = vmatprep.subr.bf16.mxu0 %v384
      %1091 = vmatpush1.bf16.msra.mxu0 %v383
      %1092 = vmatprep.subr.bf16.mxu0 %v381
      %1093 = vmatpush1.bf16.msra.mxu0 %v380
      %1094 = vmatprep.subr.bf16.mxu0 %v378
      %1095 = vmatpush1.bf16.msra.mxu0 %v377
      %1096 = vmatprep.subr.bf16.mxu0 %v375
      %1097 = vmatpush1.bf16.msra.mxu0 %v374
      %1098 = vmatprep.subr.bf16.mxu0 %v372
      %1099 = vmatpush1.bf16.msra.mxu0 %v371
      %1100 = vmatprep.subr.bf16.mxu0 0
      %1101 = vmatpush2.bf16.msra.mxu0 0
      %1102 = vmatprep.subr.bf16.mxu0 0
      %1103 = vmatpush2.bf16.msra.mxu0 0
      %1104 = vmatprep.subr.bf16.mxu0 0
      %1105 = vmatpush2.bf16.msra.mxu0 0
      %1106 = vmatprep.subr.bf16.mxu0 0
      %1107 = vmatpush2.bf16.msra.mxu0 0
      %1108 = vmatprep.subr.bf16.mxu0 0
      %1109 = vmatpush2.bf16.msra.mxu0 0
      %1110 = vmatprep.subr.bf16.mxu0 0
      %1111 = vmatpush2.bf16.msra.mxu0 0
      %1112 = vmatprep.subr.bf16.mxu0 0
      %1113 = vmatpush2.bf16.msra.mxu0 0
      %1114 = vmatprep.subr.bf16.mxu0 0
      %1115 = vmatpush2.bf16.msra.mxu0 0
      %1116 = vmatprep.mubr.bf16.mxu0 0
      %1117 = vmatmul.mubr.bf16.gmra.mxu0 %v1083
      %v1118 = vpop.f32.mrf.mxu0
      %v1119 = vadd.f32 0.0, %v1118
      %v1120 = vpop.f32.mrf.mxu0
      %v1121 = vadd.f32 0.0, %v1120
      %v1122 = vpop.f32.mrf.mxu0
      %v1123 = vpop.f32.mrf.mxu0
      %1124 = vdwg.mxu0
      %1125 = vmatprep.subr.bf16.mxu0 0
      %1126 = vmatpush1.bf16.msra.mxu0 %v394
      %1127 = vmatprep.subr.bf16.mxu0 0
      %1128 = vmatpush1.bf16.msra.mxu0 %v391
      %1129 = vmatprep.subr.bf16.mxu0 0
      %1130 = vmatpush1.bf16.msra.mxu0 %v388
      %1131 = vmatprep.subr.bf16.mxu0 0
      %1132 = vmatpush1.bf16.msra.mxu0 %v385
      %1133 = vmatprep.subr.bf16.mxu0 0
      %1134 = vmatpush1.bf16.msra.mxu0 %v382
      %1135 = vmatprep.subr.bf16.mxu0 0
      %1136 = vmatpush1.bf16.msra.mxu0 %v379
      %1137 = vmatprep.subr.bf16.mxu0 0
      %1138 = vmatpush1.bf16.msra.mxu0 %v376
      %1139 = vmatprep.subr.bf16.mxu0 0
      %1140 = vmatpush1.bf16.msra.mxu0 %v373
      %1141 = vmatprep.subr.bf16.mxu0 0
      %1142 = vmatpush2.bf16.msra.mxu0 0
      %1143 = vmatprep.subr.bf16.mxu0 0
      %1144 = vmatpush2.bf16.msra.mxu0 0
      %1145 = vmatprep.subr.bf16.mxu0 0
      %1146 = vmatpush2.bf16.msra.mxu0 0
      %1147 = vmatprep.subr.bf16.mxu0 0
      %1148 = vmatpush2.bf16.msra.mxu0 0
      %1149 = vmatprep.subr.bf16.mxu0 0
      %1150 = vmatpush2.bf16.msra.mxu0 0
      %1151 = vmatprep.subr.bf16.mxu0 0
      %1152 = vmatpush2.bf16.msra.mxu0 0
      %1153 = vmatprep.subr.bf16.mxu0 0
      %1154 = vmatpush2.bf16.msra.mxu0 0
      %1155 = vmatprep.subr.bf16.mxu0 0
      %1156 = vmatpush2.bf16.msra.mxu0 0
      %1157 = vmatprep.mubr.bf16.mxu0 0
      %1158 = vmatmul.mubr.bf16.gmra.mxu0 %v1083
      %v1159 = vpop.f32.mrf.mxu0
      %v1160 = vadd.f32 0.0, %v1159
      %v1161 = vpop.f32.mrf.mxu0
      %v1162 = vpop.f32.mrf.mxu0
      %v1163 = vpop.f32.mrf.mxu0
      %1164 = vdwg.mxu0
      %v1165 = vadd.f32 %v1080, %v1119
      %v1166 = vxor.u32 %v1165, 2147483648
      %v1167 = vmul.f32 %v1166, 1.442695
      %v1168 = vpow.pop %v1167
      %v1169 = vadd.f32 %v1168, 1.0
      %v1170 = vrcp.pop %v1169
      %v1171 = vmul.f32 1.0, %v1170
      %v1172 = vadd.f32 %v1081, %v1121
      %v1173 = vxor.u32 %v1172, 2147483648
      %v1174 = vmul.f32 %v1173, 1.442695
      %v1175 = vpow.pop %v1174
      %v1176 = vadd.f32 %v1175, 1.0
      %v1177 = vrcp.pop %v1176
      %v1178 = vmul.f32 1.0, %v1177
      %v1179 = vadd.f32 %v1160, %v518
      %v1180 = vmul.f32 %v1171, %v1179
      %v1181 = vadd.f32 %v1082, %v1180
      %v1182 = vtanh.pop %v1181
      %v1183 = vsub.f32 1.0, %v1178
      %v1184 = vmul.f32 %v1183, %v1182
      %v1185 = vmul.f32 %v1178, %v1076
      %v1186 = vadd.f32 %v1184, %v1185
      %s1187 = scalar_lea.vmem %s245, 48
      %1188 = vst [vmem:[%s1187] sm:$0xff] %v1186
      %s1189 = scalar_lea.vmem %s227, 168
      %v1190 = vld [vmem:[%s1189] sm:$0xff]
      %v1191 = vld [vmem:[%s1189 + $0x8] sm:$0xff]
      %v1192 = vld [vmem:[%s1189 + $0x10] sm:$0xff]
      %v1193 = vpack.c.bf16 %v1186, %v1186
      %1194 = vmatprep.subr.bf16.mxu0 %v393
      %1195 = vmatpush1.bf16.msra.mxu0 %v392
      %1196 = vmatprep.subr.bf16.mxu0 %v390
      %1197 = vmatpush1.bf16.msra.mxu0 %v389
      %1198 = vmatprep.subr.bf16.mxu0 %v387
      %1199 = vmatpush1.bf16.msra.mxu0 %v386
      %1200 = vmatprep.subr.bf16.mxu0 %v384
      %1201 = vmatpush1.bf16.msra.mxu0 %v383
      %1202 = vmatprep.subr.bf16.mxu0 %v381
      %1203 = vmatpush1.bf16.msra.mxu0 %v380
      %1204 = vmatprep.subr.bf16.mxu0 %v378
      %1205 = vmatpush1.bf16.msra.mxu0 %v377
      %1206 = vmatprep.subr.bf16.mxu0 %v375
      %1207 = vmatpush1.bf16.msra.mxu0 %v374
      %1208 = vmatprep.subr.bf16.mxu0 %v372
      %1209 = vmatpush1.bf16.msra.mxu0 %v371
      %1210 = vmatprep.subr.bf16.mxu0 0
      %1211 = vmatpush2.bf16.msra.mxu0 0
      %1212 = vmatprep.subr.bf16.mxu0 0
      %1213 = vmatpush2.bf16.msra.mxu0 0
      %1214 = vmatprep.subr.bf16.mxu0 0
      %1215 = vmatpush2.bf16.msra.mxu0 0
      %1216 = vmatprep.subr.bf16.mxu0 0
      %1217 = vmatpush2.bf16.msra.mxu0 0
      %1218 = vmatprep.subr.bf16.mxu0 0
      %1219 = vmatpush2.bf16.msra.mxu0 0
      %1220 = vmatprep.subr.bf16.mxu0 0
      %1221 = vmatpush2.bf16.msra.mxu0 0
      %1222 = vmatprep.subr.bf16.mxu0 0
      %1223 = vmatpush2.bf16.msra.mxu0 0
      %1224 = vmatprep.subr.bf16.mxu0 0
      %1225 = vmatpush2.bf16.msra.mxu0 0
      %1226 = vmatprep.mubr.bf16.mxu0 0
      %1227 = vmatmul.mubr.bf16.gmra.mxu0 %v1193
      %v1228 = vpop.f32.mrf.mxu0
      %v1229 = vadd.f32 0.0, %v1228
      %v1230 = vpop.f32.mrf.mxu0
      %v1231 = vadd.f32 0.0, %v1230
      %v1232 = vpop.f32.mrf.mxu0
      %v1233 = vpop.f32.mrf.mxu0
      %1234 = vdwg.mxu0
      %1235 = vmatprep.subr.bf16.mxu0 0
      %1236 = vmatpush1.bf16.msra.mxu0 %v394
      %1237 = vmatprep.subr.bf16.mxu0 0
      %1238 = vmatpush1.bf16.msra.mxu0 %v391
      %1239 = vmatprep.subr.bf16.mxu0 0
      %1240 = vmatpush1.bf16.msra.mxu0 %v388
      %1241 = vmatprep.subr.bf16.mxu0 0
      %1242 = vmatpush1.bf16.msra.mxu0 %v385
      %1243 = vmatprep.subr.bf16.mxu0 0
      %1244 = vmatpush1.bf16.msra.mxu0 %v382
      %1245 = vmatprep.subr.bf16.mxu0 0
      %1246 = vmatpush1.bf16.msra.mxu0 %v379
      %1247 = vmatprep.subr.bf16.mxu0 0
      %1248 = vmatpush1.bf16.msra.mxu0 %v376
      %1249 = vmatprep.subr.bf16.mxu0 0
      %1250 = vmatpush1.bf16.msra.mxu0 %v373
      %1251 = vmatprep.subr.bf16.mxu0 0
      %1252 = vmatpush2.bf16.msra.mxu0 0
      %1253 = vmatprep.subr.bf16.mxu0 0
      %1254 = vmatpush2.bf16.msra.mxu0 0
      %1255 = vmatprep.subr.bf16.mxu0 0
      %1256 = vmatpush2.bf16.msra.mxu0 0
      %1257 = vmatprep.subr.bf16.mxu0 0
      %1258 = vmatpush2.bf16.msra.mxu0 0
      %1259 = vmatprep.subr.bf16.mxu0 0
      %1260 = vmatpush2.bf16.msra.mxu0 0
      %1261 = vmatprep.subr.bf16.mxu0 0
      %1262 = vmatpush2.bf16.msra.mxu0 0
      %1263 = vmatprep.subr.bf16.mxu0 0
      %1264 = vmatpush2.bf16.msra.mxu0 0
      %1265 = vmatprep.subr.bf16.mxu0 0
      %1266 = vmatpush2.bf16.msra.mxu0 0
      %1267 = vmatprep.mubr.bf16.mxu0 0
      %1268 = vmatmul.mubr.bf16.gmra.mxu0 %v1193
      %v1269 = vpop.f32.mrf.mxu0
      %v1270 = vadd.f32 0.0, %v1269
      %v1271 = vpop.f32.mrf.mxu0
      %v1272 = vpop.f32.mrf.mxu0
      %v1273 = vpop.f32.mrf.mxu0
      %1274 = vdwg.mxu0
      %v1275 = vadd.f32 %v1190, %v1229
      %v1276 = vxor.u32 %v1275, 2147483648
      %v1277 = vmul.f32 %v1276, 1.442695
      %v1278 = vpow.pop %v1277
      %v1279 = vadd.f32 %v1278, 1.0
      %v1280 = vrcp.pop %v1279
      %v1281 = vmul.f32 1.0, %v1280
      %v1282 = vadd.f32 %v1191, %v1231
      %v1283 = vxor.u32 %v1282, 2147483648
      %v1284 = vmul.f32 %v1283, 1.442695
      %v1285 = vpow.pop %v1284
      %v1286 = vadd.f32 %v1285, 1.0
      %v1287 = vrcp.pop %v1286
      %v1288 = vmul.f32 1.0, %v1287
      %v1289 = vadd.f32 %v1270, %v518
      %v1290 = vmul.f32 %v1281, %v1289
      %v1291 = vadd.f32 %v1192, %v1290
      %v1292 = vtanh.pop %v1291
      %v1293 = vsub.f32 1.0, %v1288
      %v1294 = vmul.f32 %v1293, %v1292
      %v1295 = vmul.f32 %v1288, %v1186
      %v1296 = vadd.f32 %v1294, %v1295
      %s1297 = scalar_lea.vmem %s245, 56
      %1298 = vst [vmem:[%s1297] sm:$0xff] %v1296
      %1299 = vst [vmem:[#allocation2] sm:$0xff] %v1296
      %s1300 = smul.u32 8, %s19
      %p1301 = scmp.lt.s32.totalorder %s18, 1
      %s1302 = scalar_select %p1301, %s18, 1
      %p1303 = scmp.lt.s32.totalorder %s1300, 7
      %s1304 = scalar_select %p1303, %s1300, 7
      %s1305 = smul.addr %s1302, 8
      %s1306 = sadd.s32 %s1304, %s1305
      %s1307 = smul.addr %s1306, 8
      %s1308 = scalar_lea.vmem %s3, %s1307
      // Predicated region
      $region37: #{rnn_encoder_forward.2} parent=31 // pred_check
        %p1309 = pneg %p126
      $region38: #{rnn_encoder_forward.2} parent=31 // pred_check_branch
        %1311 = sbr.rel (%p1309) target = $region40
      $region39: #{rnn_encoder_forward.2} parent=31 // pred_region
        %s1312 = smul.u32 8, %s19
      $region40: #{rnn_encoder_forward.2} parent=31 // pred_fallthru
        _
    $region32: #{rnn_encoder_forward.2} parent=5 // pred_fallthru
      _
    %p1313 = scmp.le.s32.totalorder 2, %s9
    // Predicated region
    $region41: #{rnn_encoder_forward.2} parent=5 // pred_check
      %p1314 = pneg %p1313
    $region42: #{rnn_encoder_forward.2} parent=5 // pred_check_branch
      %1316 = sbr.rel (%p1314) target = $region44
    $region43: #{rnn_encoder_forward.2} parent=5 // pred_region
      %s1317 = ssub.s32 %s9, 2
      // Predicated region
      $region45: #{rnn_encoder_forward.2} parent=43 // pred_check
        %p1318 = pneg %p132
      $region46: #{rnn_encoder_forward.2} parent=43 // pred_check_branch
        %1320 = sbr.rel (%p1318) target = $region48
      $region47: #{rnn_encoder_forward.2} parent=43 // pred_region
        %s1321 = smul.u32 8, %s21
        %p1322 = scmp.lt.s32.totalorder %s20, 1
        %s1323 = scalar_select %p1322, %s20, 1
        %p1324 = scmp.lt.s32.totalorder %s1321, 7
        %s1325 = scalar_select %p1324, %s1321, 7
        %s1326 = smul.addr %s1323, 8
        %s1327 = sadd.s32 %s1325, %s1326
        %s1328 = smul.addr %s1327, 8
        %s1329 = scalar_lea.vmem %s3, %s1328
      $region48: #{rnn_encoder_forward.2} parent=43 // pred_fallthru
        _
    $region44: #{rnn_encoder_forward.2} parent=5 // pred_fallthru
      _
  $region6: #{rnn_encoder_forward.2} parent=0 // loop_footer
    %s13 = sadd.s32 1, %s9
  $region7: #{rnn_encoder_forward.2} parent=0 // loop_footer_branch
    %8 = sbr.rel target = $region3
  $region8: #{rnn_encoder_forward.2} parent=0 // loop_exit
    _

</llo_original>
